<compile_context>
chip_gen: v7x
topology: tpu7x:2x2x1
jax: 0.10.0
libtpu: 0.0.40
codegen_flags: <defaults>
</compile_context>

<pallas_src>
import math

import jax
import jax.numpy as jnp
from jax.experimental import pallas as pl
from jax.experimental.pallas import tpu as pltpu

# ---------------- config (small, consistent with BertConfig fields) -----------
B = 2           # batch
L = 8           # sequence length
D = 32          # hidden_size
H = 4           # num_attention_heads
HD = D // H     # attention_head_size
I = 64          # intermediate_size
BL = B * L
LN_EPS = 1e-12
NEG_BIG = -1e9  # finite cross-batch block mask (avoids inf-inf=NaN after max-subtract)


def _gelu(x):
    # matches reference: x * 0.5 * (1 + erf(x / sqrt(2)))
    return x * 0.5 * (1.0 + jax.lax.erf(x / math.sqrt(2.0)))


def _layernorm(x, gamma, beta):
    u = jnp.mean(x, axis=-1, keepdims=True)
    xc = x - u
    var = jnp.mean(xc * xc, axis=-1, keepdims=True)
    return xc * jax.lax.rsqrt(var + LN_EPS) * gamma + beta


def bert_layer_kernel(x_ref, mask_ref, wqkv_ref, wo_ref, wi_ref, wout_ref, vec_ref,
                      out_ref):
    x = x_ref[...]                                   # (BL, D) f32
    vec = vec_ref[...]                               # (8, 128) packed small vectors

    # (1, N) slices broadcast naturally along sublanes (no row-0 relayout).
    bqkv  = vec[0:1, 0:3 * D]                        # (1, 3D); Q part pre-scaled
    bo    = vec[1:2, 0:D]
    ln1_g = vec[2:3, 0:D]
    ln1_b = vec[3:4, 0:D]
    bi    = vec[4:5, 0:I]
    bout  = vec[5:6, 0:D]
    ln2_g = vec[6:7, 0:D]
    ln2_b = vec[7:8, 0:D]

    # ---- fused QKV projection: one MXU push; 1/sqrt(HD) folded into Q columns ----
    qkv = jnp.dot(x, wqkv_ref[...], preferred_element_type=jnp.float32) + bqkv  # (BL, 3D)

    # Full (BL, BL) additive mask, loaded once (key padding + cross-batch -1e9 blocks).
    mask = mask_ref[...]

    # ---- multi-head attention with batch folded into matmul rows ----
    ctx_parts = []
    for h in range(H):                               # H=4, unrolled at trace time
        qh = qkv[:, h * HD:(h + 1) * HD]                     # (BL, HD), already scaled
        kh = qkv[:, D + h * HD:D + (h + 1) * HD]             # (BL, HD)
        vh = qkv[:, 2 * D + h * HD:2 * D + (h + 1) * HD]     # (BL, HD)

        s = jnp.einsum('ld,md->lm', qh, kh,
                       preferred_element_type=jnp.float32) + mask        # (BL, BL)
        m = jnp.max(s, axis=-1, keepdims=True)
        e = jnp.exp(s - m)                                   # cross-batch entries -> 0
        p = e * pl.reciprocal(jnp.sum(e, axis=-1, keepdims=True), approx=True)
        ctx_parts.append(jnp.dot(p, vh, preferred_element_type=jnp.float32))  # (BL, HD)

    # Intra-vreg lane concat (H*HD = 32 lanes total) -> single output projection.
    ctx = jnp.concatenate(ctx_parts, axis=-1)                             # (BL, D)
    attn = jnp.dot(ctx, wo_ref[...], preferred_element_type=jnp.float32) + bo

    # ---- BertSelfOutput: residual + LayerNorm ----
    h1 = _layernorm(attn + x, ln1_g, ln1_b)

    # ---- BertIntermediate: dense + gelu ----
    inter = _gelu(jnp.dot(h1, wi_ref[...], preferred_element_type=jnp.float32) + bi)

    # ---- BertOutput: dense + residual + LayerNorm ----
    out = jnp.dot(inter, wout_ref[...], preferred_element_type=jnp.float32) + bout
    out = _layernorm(out + h1, ln2_g, ln2_b)

    out_ref[...] = out.astype(out_ref.dtype)


def _vmem_spec():
    return pl.BlockSpec(memory_space=pltpu.MemorySpace.VMEM)


@jax.jit
def bert_layer(hidden_states, key_mask, kernel_params):
    """hidden_states: (B, L, D); key_mask: (B, L) additive mask (0 keep, -1e4 masked).

    kernel_params = (wqkv_scaled, wo, wi, wout, vec_slab) from pack_params().
    """
    x2 = hidden_states.reshape(BL, D)
    # Precompute the full (BL, BL) additive mask once (the PyTorch module likewise
    # receives a precomputed extended attention mask): key-padding columns plus a
    # large finite negative on cross-batch blocks so batch folds into matmul rows.
    tok_b = jnp.arange(BL, dtype=jnp.int32) // L
    same_batch = tok_b[:, None] == tok_b[None, :]
    mask_full = jnp.where(same_batch,
                          jnp.broadcast_to(key_mask.reshape(1, BL), (BL, BL)),
                          jnp.float32(NEG_BIG))

    n_in = 2 + len(kernel_params)
    out2 = pl.pallas_call(
        bert_layer_kernel,
        out_shape=jax.ShapeDtypeStruct((BL, D), jnp.float32),
        in_specs=[_vmem_spec() for _ in range(n_in)],
        out_specs=_vmem_spec(),
    )(x2, mask_full, *kernel_params)
    return out2.reshape(B, L, D)


def make_raw_params(key):
    """Raw BERT-layer parameters (x @ W layout, 1-D biases) — used by the reference."""
    ks = jax.random.split(key, 12)

    def lin(kw, kb, fan_in, fan_out):
        w = jax.random.normal(kw, (fan_in, fan_out), jnp.float32) * 0.02
        b = jax.random.normal(kb, (fan_out,), jnp.float32) * 0.02
        return w, b

    wq, bq = lin(ks[0], ks[1], D, D)
    wk, bk = lin(ks[2], ks[3], D, D)
    wv, bv = lin(ks[4], ks[5], D, D)
    wo, bo = lin(ks[6], ks[7], D, D)
    wi, bi = lin(ks[8], ks[9], D, I)
    wout, bout = lin(ks[10], ks[11], I, D)
    g1 = jnp.ones((D,), jnp.float32); b1 = jnp.zeros((D,), jnp.float32)
    g2 = jnp.ones((D,), jnp.float32); b2 = jnp.zeros((D,), jnp.float32)
    return (wq, bq, wk, bk, wv, bv, wo, bo, wi, bi, wout, bout, g1, b1, g2, b2)


def pack_params(raw):
    """One-time packing for the kernel: fused QKV (scale folded into Q), and all small
    vectors packed into a single (8, 128) lane-padded slab (one DMA instead of eight)."""
    (wq, bq, wk, bk, wv, bv, wo, bo, wi, bi, wout, bout, g1, b1, g2, b2) = raw
    scale = 1.0 / math.sqrt(HD)
    wqkv = jnp.concatenate([wq * scale, wk, wv], axis=1)          # (D, 3D)
    bqkv = jnp.concatenate([bq * scale, bk, bv], axis=0)          # (3D,)

    slab = jnp.zeros((8, 128), jnp.float32)
    slab = slab.at[0, :3 * D].set(bqkv)
    slab = slab.at[1, :D].set(bo)
    slab = slab.at[2, :D].set(g1)
    slab = slab.at[3, :D].set(b1)
    slab = slab.at[4, :I].set(bi)
    slab = slab.at[5, :D].set(bout)
    slab = slab.at[6, :D].set(g2)
    slab = slab.at[7, :D].set(b2)
    return (wqkv, wo, wi, wout, slab)


def reference_bert_layer(hidden_states, key_mask, raw):
    """Pure-JAX reference matching the PyTorch BertLayer forward (eval mode)."""
    (wq, bq, wk, bk, wv, bv, wo, bo, wi, bi, wout, bout, g1, b1, g2, b2) = raw
    x = hidden_states
    q = x @ wq + bq
    k = x @ wk + bk
    v = x @ wv + bv

    def split(t):  # (B, L, D) -> (B, H, L, HD)
        return t.reshape(B, L, H, HD).transpose(0, 2, 1, 3)

    qh, kh, vh = split(q), split(k), split(v)
    mask4 = key_mask[:, None, None, :]                      # (B,1,1,L) additive mask
    scores = jnp.einsum('bhld,bhmd->bhlm', qh, kh) / math.sqrt(HD) + mask4
    probs = jax.nn.softmax(scores, axis=-1)
    ctx = jnp.einsum('bhlm,bhmd->bhld', probs, vh)
    ctx = ctx.transpose(0, 2, 1, 3).reshape(B, L, D)

    def ln(t, g, bb):
        u = t.mean(-1, keepdims=True)
        s = ((t - u) ** 2).mean(-1, keepdims=True)
        return (t - u) / jnp.sqrt(s + LN_EPS) * g + bb

    attn_out = ln(ctx @ wo + bo + x, g1, b1)
    inter = _gelu(attn_out @ wi + bi)
    return ln(inter @ wout + bout + attn_out, g2, b2)


if __name__ == "__main__":
    key = jax.random.PRNGKey(0)
    k1, k2, k3 = jax.random.split(key, 3)

    hidden_states = jax.random.normal(k1, (B, L, D), jnp.float32)
    # additive key mask: 0 for kept key positions, -10000 for masked ones
    keep = (jax.random.uniform(k2, (B, L)) > 0.2).astype(jnp.float32)
    key_mask = (1.0 - keep) * -10000.0

    raw_params = make_raw_params(k3)
    kernel_params = pack_params(raw_params)

    out = jax.block_until_ready(bert_layer(hidden_states, key_mask, kernel_params))
    ref = reference_bert_layer(hidden_states, key_mask, raw_params)

    assert out.shape == (B, L, D)
    # tolerance accounts for the EUP approximate-reciprocal softmax normalization
    assert jnp.allclose(out, ref, atol=2e-3, rtol=2e-3), "mismatch vs reference"

    print("KERNEL_OK")
</pallas_src>

<mosaic_0001>
module attributes {stable_mosaic.version = 11 : i64} {
  func.func @bert_layer_kernel(%arg0: memref<16x32xf32, #tpu.memory_space<vmem>>, %arg1: memref<16x16xf32, #tpu.memory_space<vmem>>, %arg2: memref<32x96xf32, #tpu.memory_space<vmem>>, %arg3: memref<32x32xf32, #tpu.memory_space<vmem>>, %arg4: memref<32x64xf32, #tpu.memory_space<vmem>>, %arg5: memref<64x32xf32, #tpu.memory_space<vmem>>, %arg6: memref<8x128xf32, #tpu.memory_space<vmem>>, %arg7: memref<16x32xf32, #tpu.memory_space<vmem>>) attributes {dimension_semantics = [], scalar_prefetch = 0 : i64, scratch_operands = 0 : i64, tpu.core_type = #tpu.core_type<tc>} {
    %c0 = arith.constant 0 : index
    %c0_0 = arith.constant 0 : index
    %0 = vector.load %arg0[%c0, %c0_0] : memref<16x32xf32, #tpu.memory_space<vmem>>, vector<16x32xf32>
    %c0_1 = arith.constant 0 : index
    %c0_2 = arith.constant 0 : index
    %1 = vector.load %arg6[%c0_1, %c0_2] : memref<8x128xf32, #tpu.memory_space<vmem>>, vector<8x128xf32>
    %2 = vector.extract_strided_slice %1 {offsets = [0, 0], sizes = [1, 96], strides = [1, 1]} : vector<8x128xf32> to vector<1x96xf32>
    %3 = vector.extract_strided_slice %1 {offsets = [1, 0], sizes = [1, 32], strides = [1, 1]} : vector<8x128xf32> to vector<1x32xf32>
    %4 = vector.extract_strided_slice %1 {offsets = [2, 0], sizes = [1, 32], strides = [1, 1]} : vector<8x128xf32> to vector<1x32xf32>
    %5 = vector.extract_strided_slice %1 {offsets = [3, 0], sizes = [1, 32], strides = [1, 1]} : vector<8x128xf32> to vector<1x32xf32>
    %6 = vector.extract_strided_slice %1 {offsets = [4, 0], sizes = [1, 64], strides = [1, 1]} : vector<8x128xf32> to vector<1x64xf32>
    %7 = vector.extract_strided_slice %1 {offsets = [5, 0], sizes = [1, 32], strides = [1, 1]} : vector<8x128xf32> to vector<1x32xf32>
    %8 = vector.extract_strided_slice %1 {offsets = [6, 0], sizes = [1, 32], strides = [1, 1]} : vector<8x128xf32> to vector<1x32xf32>
    %9 = vector.extract_strided_slice %1 {offsets = [7, 0], sizes = [1, 32], strides = [1, 1]} : vector<8x128xf32> to vector<1x32xf32>
    %c0_3 = arith.constant 0 : index
    %c0_4 = arith.constant 0 : index
    %10 = vector.load %arg2[%c0_3, %c0_4] : memref<32x96xf32, #tpu.memory_space<vmem>>, vector<32x96xf32>
    %cst = arith.constant dense<0.000000e+00> : vector<16x96xf32>
    %11 = tpu.matmul %0, %10, %cst {dimension_numbers = #tpu.dot_dimension_numbers<[1], [0], [0], [1], [0, 0, 1, 1], [], []>} : vector<16x32xf32>, vector<32x96xf32>, vector<16x96xf32> -> vector<16x96xf32>
    %12 = vector.broadcast %2 : vector<1x96xf32> to vector<16x96xf32>
    %13 = arith.addf %11, %12 : vector<16x96xf32>
    %c0_5 = arith.constant 0 : index
    %c0_6 = arith.constant 0 : index
    %14 = vector.load %arg1[%c0_5, %c0_6] : memref<16x16xf32, #tpu.memory_space<vmem>>, vector<16x16xf32>
    %15 = vector.extract_strided_slice %13 {offsets = [0, 0], sizes = [16, 8], strides = [1, 1]} : vector<16x96xf32> to vector<16x8xf32>
    %16 = vector.extract_strided_slice %13 {offsets = [0, 32], sizes = [16, 8], strides = [1, 1]} : vector<16x96xf32> to vector<16x8xf32>
    %17 = vector.extract_strided_slice %13 {offsets = [0, 64], sizes = [16, 8], strides = [1, 1]} : vector<16x96xf32> to vector<16x8xf32>
    "tpu.trace_start"() <{level = 10 : i32, message = "ld,md->lm"}> : () -> ()
    %cst_7 = arith.constant dense<0.000000e+00> : vector<16x16xf32>
    %18 = tpu.matmul %15, %16, %cst_7 {dimension_numbers = #tpu.dot_dimension_numbers<[1], [1], [0], [0], [0, 0, 1, 0], [], []>} : vector<16x8xf32>, vector<16x8xf32>, vector<16x16xf32> -> vector<16x16xf32>
    "tpu.trace_stop"() : () -> ()
    %19 = arith.addf %18, %14 : vector<16x16xf32>
    %cst_8 = arith.constant dense<0xFF800000> : vector<16xf32>
    %20 = vector.multi_reduction <maximumf>, %19, %cst_8 [1] : vector<16x16xf32> to vector<16xf32>
    %21 = vector.shape_cast %20 : vector<16xf32> to vector<16x1xf32>
    %22 = vector.broadcast %21 : vector<16x1xf32> to vector<16x16xf32>
    %23 = arith.subf %19, %22 : vector<16x16xf32>
    %24 = math.exp %23 : vector<16x16xf32>
    %cst_9 = arith.constant dense<0.000000e+00> : vector<16xf32>
    %25 = vector.multi_reduction <add>, %24, %cst_9 [1] : vector<16x16xf32> to vector<16xf32>
    %26 = vector.shape_cast %25 : vector<16xf32> to vector<16x1xf32>
    %27 = tpu.reciprocal %26 {approx = true} : vector<16x1xf32> -> vector<16x1xf32>
    %28 = vector.broadcast %27 : vector<16x1xf32> to vector<16x16xf32>
    %29 = arith.mulf %24, %28 : vector<16x16xf32>
    %cst_10 = arith.constant dense<0.000000e+00> : vector<16x8xf32>
    %30 = tpu.matmul %29, %17, %cst_10 {dimension_numbers = #tpu.dot_dimension_numbers<[1], [0], [0], [1], [0, 0, 1, 1], [], []>} : vector<16x16xf32>, vector<16x8xf32>, vector<16x8xf32> -> vector<16x8xf32>
    %31 = vector.extract_strided_slice %13 {offsets = [0, 8], sizes = [16, 8], strides = [1, 1]} : vector<16x96xf32> to vector<16x8xf32>
    %32 = vector.extract_strided_slice %13 {offsets = [0, 40], sizes = [16, 8], strides = [1, 1]} : vector<16x96xf32> to vector<16x8xf32>
    %33 = vector.extract_strided_slice %13 {offsets = [0, 72], sizes = [16, 8], strides = [1, 1]} : vector<16x96xf32> to vector<16x8xf32>
    "tpu.trace_start"() <{level = 10 : i32, message = "ld,md->lm"}> : () -> ()
    %cst_11 = arith.constant dense<0.000000e+00> : vector<16x16xf32>
    %34 = tpu.matmul %31, %32, %cst_11 {dimension_numbers = #tpu.dot_dimension_numbers<[1], [1], [0], [0], [0, 0, 1, 0], [], []>} : vector<16x8xf32>, vector<16x8xf32>, vector<16x16xf32> -> vector<16x16xf32>
    "tpu.trace_stop"() : () -> ()
    %35 = arith.addf %34, %14 : vector<16x16xf32>
    %cst_12 = arith.constant dense<0xFF800000> : vector<16xf32>
    %36 = vector.multi_reduction <maximumf>, %35, %cst_12 [1] : vector<16x16xf32> to vector<16xf32>
    %37 = vector.shape_cast %36 : vector<16xf32> to vector<16x1xf32>
    %38 = vector.broadcast %37 : vector<16x1xf32> to vector<16x16xf32>
    %39 = arith.subf %35, %38 : vector<16x16xf32>
    %40 = math.exp %39 : vector<16x16xf32>
    %cst_13 = arith.constant dense<0.000000e+00> : vector<16xf32>
    %41 = vector.multi_reduction <add>, %40, %cst_13 [1] : vector<16x16xf32> to vector<16xf32>
    %42 = vector.shape_cast %41 : vector<16xf32> to vector<16x1xf32>
    %43 = tpu.reciprocal %42 {approx = true} : vector<16x1xf32> -> vector<16x1xf32>
    %44 = vector.broadcast %43 : vector<16x1xf32> to vector<16x16xf32>
    %45 = arith.mulf %40, %44 : vector<16x16xf32>
    %cst_14 = arith.constant dense<0.000000e+00> : vector<16x8xf32>
    %46 = tpu.matmul %45, %33, %cst_14 {dimension_numbers = #tpu.dot_dimension_numbers<[1], [0], [0], [1], [0, 0, 1, 1], [], []>} : vector<16x16xf32>, vector<16x8xf32>, vector<16x8xf32> -> vector<16x8xf32>
    %47 = vector.extract_strided_slice %13 {offsets = [0, 16], sizes = [16, 8], strides = [1, 1]} : vector<16x96xf32> to vector<16x8xf32>
    %48 = vector.extract_strided_slice %13 {offsets = [0, 48], sizes = [16, 8], strides = [1, 1]} : vector<16x96xf32> to vector<16x8xf32>
    %49 = vector.extract_strided_slice %13 {offsets = [0, 80], sizes = [16, 8], strides = [1, 1]} : vector<16x96xf32> to vector<16x8xf32>
    "tpu.trace_start"() <{level = 10 : i32, message = "ld,md->lm"}> : () -> ()
    %cst_15 = arith.constant dense<0.000000e+00> : vector<16x16xf32>
    %50 = tpu.matmul %47, %48, %cst_15 {dimension_numbers = #tpu.dot_dimension_numbers<[1], [1], [0], [0], [0, 0, 1, 0], [], []>} : vector<16x8xf32>, vector<16x8xf32>, vector<16x16xf32> -> vector<16x16xf32>
    "tpu.trace_stop"() : () -> ()
    %51 = arith.addf %50, %14 : vector<16x16xf32>
    %cst_16 = arith.constant dense<0xFF800000> : vector<16xf32>
    %52 = vector.multi_reduction <maximumf>, %51, %cst_16 [1] : vector<16x16xf32> to vector<16xf32>
    %53 = vector.shape_cast %52 : vector<16xf32> to vector<16x1xf32>
    %54 = vector.broadcast %53 : vector<16x1xf32> to vector<16x16xf32>
    %55 = arith.subf %51, %54 : vector<16x16xf32>
    %56 = math.exp %55 : vector<16x16xf32>
    %cst_17 = arith.constant dense<0.000000e+00> : vector<16xf32>
    %57 = vector.multi_reduction <add>, %56, %cst_17 [1] : vector<16x16xf32> to vector<16xf32>
    %58 = vector.shape_cast %57 : vector<16xf32> to vector<16x1xf32>
    %59 = tpu.reciprocal %58 {approx = true} : vector<16x1xf32> -> vector<16x1xf32>
    %60 = vector.broadcast %59 : vector<16x1xf32> to vector<16x16xf32>
    %61 = arith.mulf %56, %60 : vector<16x16xf32>
    %cst_18 = arith.constant dense<0.000000e+00> : vector<16x8xf32>
    %62 = tpu.matmul %61, %49, %cst_18 {dimension_numbers = #tpu.dot_dimension_numbers<[1], [0], [0], [1], [0, 0, 1, 1], [], []>} : vector<16x16xf32>, vector<16x8xf32>, vector<16x8xf32> -> vector<16x8xf32>
    %63 = vector.extract_strided_slice %13 {offsets = [0, 24], sizes = [16, 8], strides = [1, 1]} : vector<16x96xf32> to vector<16x8xf32>
    %64 = vector.extract_strided_slice %13 {offsets = [0, 56], sizes = [16, 8], strides = [1, 1]} : vector<16x96xf32> to vector<16x8xf32>
    %65 = vector.extract_strided_slice %13 {offsets = [0, 88], sizes = [16, 8], strides = [1, 1]} : vector<16x96xf32> to vector<16x8xf32>
    "tpu.trace_start"() <{level = 10 : i32, message = "ld,md->lm"}> : () -> ()
    %cst_19 = arith.constant dense<0.000000e+00> : vector<16x16xf32>
    %66 = tpu.matmul %63, %64, %cst_19 {dimension_numbers = #tpu.dot_dimension_numbers<[1], [1], [0], [0], [0, 0, 1, 0], [], []>} : vector<16x8xf32>, vector<16x8xf32>, vector<16x16xf32> -> vector<16x16xf32>
    "tpu.trace_stop"() : () -> ()
    %67 = arith.addf %66, %14 : vector<16x16xf32>
    %cst_20 = arith.constant dense<0xFF800000> : vector<16xf32>
    %68 = vector.multi_reduction <maximumf>, %67, %cst_20 [1] : vector<16x16xf32> to vector<16xf32>
    %69 = vector.shape_cast %68 : vector<16xf32> to vector<16x1xf32>
    %70 = vector.broadcast %69 : vector<16x1xf32> to vector<16x16xf32>
    %71 = arith.subf %67, %70 : vector<16x16xf32>
    %72 = math.exp %71 : vector<16x16xf32>
    %cst_21 = arith.constant dense<0.000000e+00> : vector<16xf32>
    %73 = vector.multi_reduction <add>, %72, %cst_21 [1] : vector<16x16xf32> to vector<16xf32>
    %74 = vector.shape_cast %73 : vector<16xf32> to vector<16x1xf32>
    %75 = tpu.reciprocal %74 {approx = true} : vector<16x1xf32> -> vector<16x1xf32>
    %76 = vector.broadcast %75 : vector<16x1xf32> to vector<16x16xf32>
    %77 = arith.mulf %72, %76 : vector<16x16xf32>
    %cst_22 = arith.constant dense<0.000000e+00> : vector<16x8xf32>
    %78 = tpu.matmul %77, %65, %cst_22 {dimension_numbers = #tpu.dot_dimension_numbers<[1], [0], [0], [1], [0, 0, 1, 1], [], []>} : vector<16x16xf32>, vector<16x8xf32>, vector<16x8xf32> -> vector<16x8xf32>
    %79 = tpu.concatenate %30, %46, %62, %78 in 1 : vector<16x8xf32>, vector<16x8xf32>, vector<16x8xf32>, vector<16x8xf32> -> vector<16x32xf32>
    %c0_23 = arith.constant 0 : index
    %c0_24 = arith.constant 0 : index
    %80 = vector.load %arg3[%c0_23, %c0_24] : memref<32x32xf32, #tpu.memory_space<vmem>>, vector<32x32xf32>
    %cst_25 = arith.constant dense<0.000000e+00> : vector<16x32xf32>
    %81 = tpu.matmul %79, %80, %cst_25 {dimension_numbers = #tpu.dot_dimension_numbers<[1], [0], [0], [1], [0, 0, 1, 1], [], []>} : vector<16x32xf32>, vector<32x32xf32>, vector<16x32xf32> -> vector<16x32xf32>
    %82 = vector.broadcast %3 : vector<1x32xf32> to vector<16x32xf32>
    %83 = arith.addf %81, %82 : vector<16x32xf32>
    %84 = arith.addf %83, %0 : vector<16x32xf32>
    %cst_26 = arith.constant dense<0.000000e+00> : vector<16xf32>
    %85 = vector.multi_reduction <add>, %84, %cst_26 [1] : vector<16x32xf32> to vector<16xf32>
    %86 = vector.shape_cast %85 : vector<16xf32> to vector<16x1xf32>
    %cst_27 = arith.constant 3.200000e+01 : f32
    %87 = vector.broadcast %cst_27 : f32 to vector<16x1xf32>
    %88 = arith.divf %86, %87 : vector<16x1xf32>
    %89 = vector.broadcast %88 : vector<16x1xf32> to vector<16x32xf32>
    %90 = arith.subf %84, %89 : vector<16x32xf32>
    %91 = arith.mulf %90, %90 : vector<16x32xf32>
    %cst_28 = arith.constant dense<0.000000e+00> : vector<16xf32>
    %92 = vector.multi_reduction <add>, %91, %cst_28 [1] : vector<16x32xf32> to vector<16xf32>
    %93 = vector.shape_cast %92 : vector<16xf32> to vector<16x1xf32>
    %cst_29 = arith.constant 3.200000e+01 : f32
    %94 = vector.broadcast %cst_29 : f32 to vector<16x1xf32>
    %95 = arith.divf %93, %94 : vector<16x1xf32>
    %cst_30 = arith.constant 9.99999996E-13 : f32
    %96 = vector.broadcast %cst_30 : f32 to vector<16x1xf32>
    %97 = arith.addf %95, %96 : vector<16x1xf32>
    %98 = math.rsqrt %97 : vector<16x1xf32>
    %99 = vector.broadcast %98 : vector<16x1xf32> to vector<16x32xf32>
    %100 = arith.mulf %90, %99 : vector<16x32xf32>
    %101 = vector.broadcast %4 : vector<1x32xf32> to vector<16x32xf32>
    %102 = arith.mulf %100, %101 : vector<16x32xf32>
    %103 = vector.broadcast %5 : vector<1x32xf32> to vector<16x32xf32>
    %104 = arith.addf %102, %103 : vector<16x32xf32>
    %c0_31 = arith.constant 0 : index
    %c0_32 = arith.constant 0 : index
    %105 = vector.load %arg4[%c0_31, %c0_32] : memref<32x64xf32, #tpu.memory_space<vmem>>, vector<32x64xf32>
    %cst_33 = arith.constant dense<0.000000e+00> : vector<16x64xf32>
    %106 = tpu.matmul %104, %105, %cst_33 {dimension_numbers = #tpu.dot_dimension_numbers<[1], [0], [0], [1], [0, 0, 1, 1], [], []>} : vector<16x32xf32>, vector<32x64xf32>, vector<16x64xf32> -> vector<16x64xf32>
    %107 = vector.broadcast %6 : vector<1x64xf32> to vector<16x64xf32>
    %108 = arith.addf %106, %107 : vector<16x64xf32>
    %cst_34 = arith.constant 5.000000e-01 : f32
    %109 = vector.broadcast %cst_34 : f32 to vector<16x64xf32>
    %110 = arith.mulf %108, %109 : vector<16x64xf32>
    %cst_35 = arith.constant 1.41421354 : f32
    %111 = vector.broadcast %cst_35 : f32 to vector<16x64xf32>
    %112 = arith.divf %108, %111 : vector<16x64xf32>
    %113 = math.erf %112 : vector<16x64xf32>
    %cst_36 = arith.constant 1.000000e+00 : f32
    %114 = vector.broadcast %cst_36 : f32 to vector<16x64xf32>
    %115 = arith.addf %114, %113 : vector<16x64xf32>
    %116 = arith.mulf %110, %115 : vector<16x64xf32>
    %c0_37 = arith.constant 0 : index
    %c0_38 = arith.constant 0 : index
    %117 = vector.load %arg5[%c0_37, %c0_38] : memref<64x32xf32, #tpu.memory_space<vmem>>, vector<64x32xf32>
    %cst_39 = arith.constant dense<0.000000e+00> : vector<16x32xf32>
    %118 = tpu.matmul %116, %117, %cst_39 {dimension_numbers = #tpu.dot_dimension_numbers<[1], [0], [0], [1], [0, 0, 1, 1], [], []>} : vector<16x64xf32>, vector<64x32xf32>, vector<16x32xf32> -> vector<16x32xf32>
    %119 = vector.broadcast %7 : vector<1x32xf32> to vector<16x32xf32>
    %120 = arith.addf %118, %119 : vector<16x32xf32>
    %121 = arith.addf %120, %104 : vector<16x32xf32>
    %cst_40 = arith.constant dense<0.000000e+00> : vector<16xf32>
    %122 = vector.multi_reduction <add>, %121, %cst_40 [1] : vector<16x32xf32> to vector<16xf32>
    %123 = vector.shape_cast %122 : vector<16xf32> to vector<16x1xf32>
    %cst_41 = arith.constant 3.200000e+01 : f32
    %124 = vector.broadcast %cst_41 : f32 to vector<16x1xf32>
    %125 = arith.divf %123, %124 : vector<16x1xf32>
    %126 = vector.broadcast %125 : vector<16x1xf32> to vector<16x32xf32>
    %127 = arith.subf %121, %126 : vector<16x32xf32>
    %128 = arith.mulf %127, %127 : vector<16x32xf32>
    %cst_42 = arith.constant dense<0.000000e+00> : vector<16xf32>
    %129 = vector.multi_reduction <add>, %128, %cst_42 [1] : vector<16x32xf32> to vector<16xf32>
    %130 = vector.shape_cast %129 : vector<16xf32> to vector<16x1xf32>
    %cst_43 = arith.constant 3.200000e+01 : f32
    %131 = vector.broadcast %cst_43 : f32 to vector<16x1xf32>
    %132 = arith.divf %130, %131 : vector<16x1xf32>
    %cst_44 = arith.constant 9.99999996E-13 : f32
    %133 = vector.broadcast %cst_44 : f32 to vector<16x1xf32>
    %134 = arith.addf %132, %133 : vector<16x1xf32>
    %135 = math.rsqrt %134 : vector<16x1xf32>
    %136 = vector.broadcast %135 : vector<16x1xf32> to vector<16x32xf32>
    %137 = arith.mulf %127, %136 : vector<16x32xf32>
    %138 = vector.broadcast %8 : vector<1x32xf32> to vector<16x32xf32>
    %139 = arith.mulf %137, %138 : vector<16x32xf32>
    %140 = vector.broadcast %9 : vector<1x32xf32> to vector<16x32xf32>
    %141 = arith.addf %139, %140 : vector<16x32xf32>
    %c0_45 = arith.constant 0 : index
    %c0_46 = arith.constant 0 : index
    %142 = vector.load %arg7[%c0_45, %c0_46] : memref<16x32xf32, #tpu.memory_space<vmem>>, vector<16x32xf32>
    tpu.vector_store %arg7[%c0_45, %c0_46], %141 {strides = array<i32>} : memref<16x32xf32, #tpu.memory_space<vmem>>, vector<16x32xf32>,
    return
  }
}

</mosaic_0001>

<llo_original>
// kernel: bert_layer.1
$region0: #{bert_layer.1}
  #allocation0 [shape = 'u32[]', space=smem, size = 0x4, offset = 0x4, fixed_abs, tag = 'smem constant byte address 0x4 - core index']
  #allocation1 [shape = 'u32[144,128]{1,0:T(1,128)}', space=vmem, size = 0x12000, scoped, tag = 'internal scratch']
  %s0 = inlined_call_operand.vmem [shape: f32[16,32], index: 0, kind: input, shape index: {}]
  %s1 = inlined_call_operand.vmem [shape: f32[16,16], index: 1, kind: input, shape index: {}]
  %s2 = inlined_call_operand.vmem [shape: f32[32,96], index: 2, kind: input, shape index: {}]
  %s3 = inlined_call_operand.vmem [shape: f32[32,32], index: 3, kind: input, shape index: {}]
  %s4 = inlined_call_operand.vmem [shape: f32[32,64], index: 4, kind: input, shape index: {}]
  %s5 = inlined_call_operand.vmem [shape: f32[64,32], index: 5, kind: input, shape index: {}]
  %s6 = inlined_call_operand.hbm [shape: f32[8,128], index: 6, kind: input, shape index: {}]
  %s7 = inlined_call_operand.hbm [shape: f32[16,32], index: 7, kind: output, shape index: {}]
  %s8 = sld [smem:[#allocation0]]
  $region42: #{bert_layer.1} parent=0
    _
  %s10 = ssub.s32 1, %s8
  %s11 = scalar_select 0, %s10, %s8
  $region1: #{bert_layer.1} parent=0
    #allocation2 [shape = 'u8[4096]{0}', space=vmem, size = 0x1000, scoped, tag = 'input window, operand 6, single buffered']
    #allocation3 [shape = 's32[1]{0}', space=sflag, size = 0x4, scoped, tag = 'scoped memory for bert_layer.1']
    #allocation4 [shape = 's32[1]{0}', space=sflag, size = 0x4, scoped, tag = 'scoped memory for bert_layer.1']
    #allocation5 [shape = 'u8[8192]{0}', space=vmem, size = 0x2000, scoped, tag = 'output window, operand 0, single buffered']
    %12 = vsyncpa [#allocation3], 0
    %13 = vsyncpa [#allocation4], 0
    // Predicated region
    $region2: #{bert_layer.1} parent=1 // pred_check
      _
    $region3: #{bert_layer.1} parent=1 // pred_check_branch
      %15 = sbr.rel (0) target = $region5
    $region4: #{bert_layer.1} parent=1 // pred_region
      _
    $region5: #{bert_layer.1} parent=1 // pred_fallthru
      _
    // Predicated region
    $region6: #{bert_layer.1} parent=1 // pred_check
      _
    $region7: #{bert_layer.1} parent=1 // pred_check_branch
      %17 = sbr.rel (0) target = $region9
    $region8: #{bert_layer.1} parent=1 // pred_region
      _
    $region9: #{bert_layer.1} parent=1 // pred_fallthru
      _
    // Predicated region
    $region10: #{bert_layer.1} parent=1 // pred_check
      _
    $region11: #{bert_layer.1} parent=1 // pred_check_branch
      %19 = sbr.rel (0) target = $region13
    $region12: #{bert_layer.1} parent=1 // pred_region
      _
    $region13: #{bert_layer.1} parent=1 // pred_fallthru
      _
    // Predicated region
    $region14: #{bert_layer.1} parent=1 // pred_check
      _
    $region15: #{bert_layer.1} parent=1 // pred_check_branch
      %21 = sbr.rel (0) target = $region17
    $region16: #{bert_layer.1} parent=1 // pred_region
      _
    $region17: #{bert_layer.1} parent=1 // pred_fallthru
      _
    // Predicated region
    $region18: #{bert_layer.1} parent=1 // pred_check
      _
    $region19: #{bert_layer.1} parent=1 // pred_check_branch
      %23 = sbr.rel (0) target = $region21
    $region20: #{bert_layer.1} parent=1 // pred_region
      _
    $region21: #{bert_layer.1} parent=1 // pred_fallthru
      _
    // Predicated region
    $region22: #{bert_layer.1} parent=1 // pred_check
      _
    $region23: #{bert_layer.1} parent=1 // pred_check_branch
      %25 = sbr.rel (0) target = $region25
    $region24: #{bert_layer.1} parent=1 // pred_region
      _
    $region25: #{bert_layer.1} parent=1 // pred_fallthru
      _
    // Predicated region
    $region26: #{bert_layer.1} parent=1 // pred_check
      _
    $region27: #{bert_layer.1} parent=1 // pred_check_branch
      %27 = sbr.rel (0) target = $region29
    $region28: #{bert_layer.1} parent=1 // pred_region
      %s29 = ssub.s32 128, 128
      %30 = vsyncadd [#allocation3], %s29
      %s32 = sshll.u32 [#allocation2], 4
      %s33 = int_to_ptr.vmem [resolvable:$true] %s32
      %35 = dma.hbm_to_vmem [thread:$0]  %s6, 128, %s33, [#allocation3]
    $region29: #{bert_layer.1} parent=1 // pred_fallthru
      _
    // Predicated region
    $region30: #{bert_layer.1} parent=1 // pred_check
      _
    $region31: #{bert_layer.1} parent=1 // pred_check_branch
      %37 = sbr.rel (0) target = $region33
    $region32: #{bert_layer.1} parent=1 // pred_region
      %38 = dma.done [#allocation3], 128
    $region33: #{bert_layer.1} parent=1 // pred_fallthru
      _
    %v39 = vld [vmem:[%s0] sm:$0xff]
    %v40 = vld [vmem:[%s0 + $0x8] sm:$0xff]
    %v41 = vld [vmem:[#allocation2] sm:$0xff]
    %v42 = vld [vmem:[%s2] sm:$0xff]
    %v43 = vld [vmem:[%s2 + $0x8] sm:$0xff]
    %v44 = vld [vmem:[%s2 + $0x10] sm:$0xff]
    %v45 = vld [vmem:[%s2 + $0x18] sm:$0xff]
    %v46 = vlaneseq
    %v47 = vshrl.u32 %v46, 7
    %v48 = vsub.s32 0, %v47
    %v49 = vrot.slane %v41, %v48
    %vm50 = vcmask 261120
    %v52 = vsel %vm50, %v39, 0
    %v55 = vsel %vm50, %v40, 0
    %57 = vmatprep.subr.mxu0 0.0
    %58 = vmatpush1.msra.mxu0 %v42
    %59 = vmatprep.subr.mxu0 0.0
    %60 = vmatpush1.msra.mxu0 %v43
    %61 = vmatprep.subr.mxu0 0.0
    %62 = vmatpush1.msra.mxu0 %v44
    %63 = vmatprep.subr.mxu0 0.0
    %64 = vmatpush1.msra.mxu0 %v45
    %65 = vmatprep.subr.mxu0 0.0
    %66 = vmatpush1.msra.mxu0 0.0
    %67 = vmatprep.subr.mxu0 0.0
    %68 = vmatpush1.msra.mxu0 0.0
    %69 = vmatprep.subr.mxu0 0.0
    %70 = vmatpush1.msra.mxu0 0.0
    %71 = vmatprep.subr.mxu0 0.0
    %72 = vmatpush1.msra.mxu0 0.0
    %73 = vmatprep.subr.mxu0 0.0
    %74 = vmatpush1.msra.mxu0 0.0
    %75 = vmatprep.subr.mxu0 0.0
    %76 = vmatpush1.msra.mxu0 0.0
    %77 = vmatprep.subr.mxu0 0.0
    %78 = vmatpush1.msra.mxu0 0.0
    %79 = vmatprep.subr.mxu0 0.0
    %80 = vmatpush1.msra.mxu0 0.0
    %81 = vmatprep.subr.mxu0 0.0
    %82 = vmatpush1.msra.mxu0 0.0
    %83 = vmatprep.subr.mxu0 0.0
    %84 = vmatpush1.msra.mxu0 0.0
    %85 = vmatprep.subr.mxu0 0.0
    %86 = vmatpush1.msra.mxu0 0.0
    %87 = vmatprep.subr.mxu0 0.0
    %88 = vmatpush1.msra.mxu0 0.0
    %89 = vmatprep.subr.mxu0 0.0
    %90 = vmatpush1.msra.mxu0 0.0
    %91 = vmatprep.subr.mxu0 0.0
    %92 = vmatpush1.msra.mxu0 0.0
    %93 = vmatprep.subr.mxu0 0.0
    %94 = vmatpush1.msra.mxu0 0.0
    %95 = vmatprep.subr.mxu0 0.0
    %96 = vmatpush1.msra.mxu0 0.0
    %97 = vmatprep.subr.mxu0 0.0
    %98 = vmatpush1.msra.mxu0 0.0
    %99 = vmatprep.subr.mxu0 0.0
    %100 = vmatpush1.msra.mxu0 0.0
    %101 = vmatprep.subr.mxu0 0.0
    %102 = vmatpush1.msra.mxu0 0.0
    %103 = vmatprep.subr.mxu0 0.0
    %104 = vmatpush1.msra.mxu0 0.0
    %105 = vmatprep.subr.mxu0 0.0
    %106 = vmatpush1.msra.mxu0 0.0
    %107 = vmatprep.subr.mxu0 0.0
    %108 = vmatpush1.msra.mxu0 0.0
    %109 = vmatprep.subr.mxu0 0.0
    %110 = vmatpush1.msra.mxu0 0.0
    %111 = vmatprep.subr.mxu0 0.0
    %112 = vmatpush1.msra.mxu0 0.0
    %113 = vmatprep.subr.mxu0 0.0
    %114 = vmatpush1.msra.mxu0 0.0
    %115 = vmatprep.subr.mxu0 0.0
    %116 = vmatpush1.msra.mxu0 0.0
    %117 = vmatprep.subr.mxu0 0.0
    %118 = vmatpush1.msra.mxu0 0.0
    %119 = vmatprep.subr.mxu0 0.0
    %120 = vmatpush1.msra.mxu0 0.0
    %121 = vmatprep.mubr.f32.mxu0 0.0
    %122 = vmatmul.mubr.f32.gmra.mrb[0].mxu0 %v52
    %v123 = vpop.f32.mrb[0].mxu0
    %v124 = vadd.f32 %v49, %v123
    %v125 = vpop.f32.mrb[0].mxu0
    %126 = vmatprep.mubr.f32.mxu0 0.0
    %127 = vmatmul.mubr.f32.gmra.mrb[0].mxu0 %v55
    %v128 = vpop.f32.mrb[0].mxu0
    %v129 = vadd.f32 %v49, %v128
    %v130 = vpop.f32.mrb[0].mxu0
    %131 = vdwg.mxu0
    %v132 = vld [vmem:[%s1] sm:$0xff]
    %v133 = vld [vmem:[%s1 + $0x8] sm:$0xff]
    %136 = vrot.lane.b32.xlu0 %v124, 96
    %v137 = vpop.permute.xlu0 %136
    %138 = vrot.lane.b32.xlu0 %v129, 96
    %v139 = vpop.permute.xlu0 %138
    %vm140 = vcmask 64512
    %v141 = vsel %vm140, %v124, 0
    %v143 = vsel %vm140, %v129, 0
    %v145 = vsel %vm140, %v137, 0
    %v147 = vsel %vm140, %v139, 0
    %149 = vmatprep.subr.mxu0 0.0
    %150 = vmatpush1.xpose.msra.mxu0 %v145
    %151 = vmatprep.subr.mxu0 0.0
    %152 = vmatpush1.xpose.msra.mxu0 %v147
    %153 = vmatprep.subr.mxu0 0.0
    %154 = vmatpush1.xpose.msra.mxu0 0.0
    %155 = vmatprep.subr.mxu0 0.0
    %156 = vmatpush1.xpose.msra.mxu0 0.0
    %157 = vmatprep.subr.mxu0 0.0
    %158 = vmatpush1.xpose.msra.mxu0 0.0
    %159 = vmatprep.subr.mxu0 0.0
    %160 = vmatpush1.xpose.msra.mxu0 0.0
    %161 = vmatprep.subr.mxu0 0.0
    %162 = vmatpush1.xpose.msra.mxu0 0.0
    %163 = vmatprep.subr.mxu0 0.0
    %164 = vmatpush1.xpose.msra.mxu0 0.0
    %165 = vmatprep.subr.mxu0 0.0
    %166 = vmatpush1.xpose.msra.mxu0 0.0
    %167 = vmatprep.subr.mxu0 0.0
    %168 = vmatpush1.xpose.msra.mxu0 0.0
    %169 = vmatprep.subr.mxu0 0.0
    %170 = vmatpush1.xpose.msra.mxu0 0.0
    %171 = vmatprep.subr.mxu0 0.0
    %172 = vmatpush1.xpose.msra.mxu0 0.0
    %173 = vmatprep.subr.mxu0 0.0
    %174 = vmatpush1.xpose.msra.mxu0 0.0
    %175 = vmatprep.subr.mxu0 0.0
    %176 = vmatpush1.xpose.msra.mxu0 0.0
    %177 = vmatprep.subr.mxu0 0.0
    %178 = vmatpush1.xpose.msra.mxu0 0.0
    %179 = vmatprep.subr.mxu0 0.0
    %180 = vmatpush1.xpose.msra.mxu0 0.0
    %181 = vmatprep.subr.mxu0 0.0
    %182 = vmatpush1.xpose.msra.mxu0 0.0
    %183 = vmatprep.subr.mxu0 0.0
    %184 = vmatpush1.xpose.msra.mxu0 0.0
    %185 = vmatprep.subr.mxu0 0.0
    %186 = vmatpush1.xpose.msra.mxu0 0.0
    %187 = vmatprep.subr.mxu0 0.0
    %188 = vmatpush1.xpose.msra.mxu0 0.0
    %189 = vmatprep.subr.mxu0 0.0
    %190 = vmatpush1.xpose.msra.mxu0 0.0
    %191 = vmatprep.subr.mxu0 0.0
    %192 = vmatpush1.xpose.msra.mxu0 0.0
    %193 = vmatprep.subr.mxu0 0.0
    %194 = vmatpush1.xpose.msra.mxu0 0.0
    %195 = vmatprep.subr.mxu0 0.0
    %196 = vmatpush1.xpose.msra.mxu0 0.0
    %197 = vmatprep.subr.mxu0 0.0
    %198 = vmatpush1.xpose.msra.mxu0 0.0
    %199 = vmatprep.subr.mxu0 0.0
    %200 = vmatpush1.xpose.msra.mxu0 0.0
    %201 = vmatprep.subr.mxu0 0.0
    %202 = vmatpush1.xpose.msra.mxu0 0.0
    %203 = vmatprep.subr.mxu0 0.0
    %204 = vmatpush1.xpose.msra.mxu0 0.0
    %205 = vmatprep.subr.mxu0 0.0
    %206 = vmatpush1.xpose.msra.mxu0 0.0
    %207 = vmatprep.subr.mxu0 0.0
    %208 = vmatpush1.xpose.msra.mxu0 0.0
    %209 = vmatprep.subr.mxu0 0.0
    %210 = vmatpush1.xpose.msra.mxu0 0.0
    %211 = vmatprep.subr.mxu0 0.0
    %212 = vmatpush1.xpose.msra.mxu0 0.0
    %213 = vmatprep.mubr.f32.mxu0 0.0
    %214 = vmatmul.mubr.f32.gmra.mrb[0].mxu0 %v141
    %v215 = vpop.f32.mrb[0].mxu0
    %v216 = vadd.f32 %v132, %v215
    %v217 = vpop.f32.mrb[0].mxu0
    %218 = vmatprep.mubr.f32.mxu0 0.0
    %219 = vmatmul.mubr.f32.gmra.mrb[0].mxu0 %v143
    %v220 = vpop.f32.mrb[0].mxu0
    %v221 = vadd.f32 %v133, %v220
    %v222 = vpop.f32.mrb[0].mxu0
    %223 = vdwg.mxu0
    %vm224 = vcmask 130048
    %v225 = vsel %vm224, %v216, -inf
    %226 = vmax.xlane.f32.xlu0 %v225
    %v227 = vpop.xlane.xlu0 %226
    %v228 = vsel %vm224, %v221, -inf
    %229 = vmax.xlane.f32.xlu0 %v228
    %v230 = vpop.xlane.xlu0 %229
    %v231 = vsub.f32 %v216, %v227
    %v232 = vsub.f32 %v221, %v230
    %v233 = vmul.f32 %v231, 1.442695
    %v234 = vpow.pop %v233
    %v235 = vmul.f32 %v232, 1.442695
    %v236 = vpow.pop %v235
    %v237 = vsel %vm224, %v234, 0.0
    %238 = vadd.xlane.f32.xlu0 %v237
    %v239 = vpop.xlane.xlu0 %238
    %v240 = vsel %vm224, %v236, 0.0
    %241 = vadd.xlane.f32.xlu0 %v240
    %v242 = vpop.xlane.xlu0 %241
    %v243 = vrcp.pop %v239
    %v244 = vrcp.pop %v242
    %v245 = vmul.f32 %v234, %v243
    %v246 = vmul.f32 %v236, %v244
    %247 = vrot.lane.b32.xlu0 %v124, 64
    %v248 = vpop.permute.xlu0 %247
    %249 = vrot.lane.b32.xlu0 %v129, 64
    %v250 = vpop.permute.xlu0 %249
    %v254 = vsel %vm224, %v245, 0
    %v257 = vsel %vm224, %v246, 0
    %259 = vmatprep.subr.mxu0 0.0
    %260 = vmatpush1.msra.mxu0 %v248
    %261 = vmatprep.subr.mxu0 0.0
    %262 = vmatpush1.msra.mxu0 %v250
    %263 = vmatprep.subr.mxu0 0.0
    %264 = vmatpush1.msra.mxu0 0.0
    %265 = vmatprep.subr.mxu0 0.0
    %266 = vmatpush1.msra.mxu0 0.0
    %267 = vmatprep.subr.mxu0 0.0
    %268 = vmatpush1.msra.mxu0 0.0
    %269 = vmatprep.subr.mxu0 0.0
    %270 = vmatpush1.msra.mxu0 0.0
    %271 = vmatprep.subr.mxu0 0.0
    %272 = vmatpush1.msra.mxu0 0.0
    %273 = vmatprep.subr.mxu0 0.0
    %274 = vmatpush1.msra.mxu0 0.0
    %275 = vmatprep.subr.mxu0 0.0
    %276 = vmatpush1.msra.mxu0 0.0
    %277 = vmatprep.subr.mxu0 0.0
    %278 = vmatpush1.msra.mxu0 0.0
    %279 = vmatprep.subr.mxu0 0.0
    %280 = vmatpush1.msra.mxu0 0.0
    %281 = vmatprep.subr.mxu0 0.0
    %282 = vmatpush1.msra.mxu0 0.0
    %283 = vmatprep.subr.mxu0 0.0
    %284 = vmatpush1.msra.mxu0 0.0
    %285 = vmatprep.subr.mxu0 0.0
    %286 = vmatpush1.msra.mxu0 0.0
    %287 = vmatprep.subr.mxu0 0.0
    %288 = vmatpush1.msra.mxu0 0.0
    %289 = vmatprep.subr.mxu0 0.0
    %290 = vmatpush1.msra.mxu0 0.0
    %291 = vmatprep.subr.mxu0 0.0
    %292 = vmatpush1.msra.mxu0 0.0
    %293 = vmatprep.subr.mxu0 0.0
    %294 = vmatpush1.msra.mxu0 0.0
    %295 = vmatprep.subr.mxu0 0.0
    %296 = vmatpush1.msra.mxu0 0.0
    %297 = vmatprep.subr.mxu0 0.0
    %298 = vmatpush1.msra.mxu0 0.0
    %299 = vmatprep.subr.mxu0 0.0
    %300 = vmatpush1.msra.mxu0 0.0
    %301 = vmatprep.subr.mxu0 0.0
    %302 = vmatpush1.msra.mxu0 0.0
    %303 = vmatprep.subr.mxu0 0.0
    %304 = vmatpush1.msra.mxu0 0.0
    %305 = vmatprep.subr.mxu0 0.0
    %306 = vmatpush1.msra.mxu0 0.0
    %307 = vmatprep.subr.mxu0 0.0
    %308 = vmatpush1.msra.mxu0 0.0
    %309 = vmatprep.subr.mxu0 0.0
    %310 = vmatpush1.msra.mxu0 0.0
    %311 = vmatprep.subr.mxu0 0.0
    %312 = vmatpush1.msra.mxu0 0.0
    %313 = vmatprep.subr.mxu0 0.0
    %314 = vmatpush1.msra.mxu0 0.0
    %315 = vmatprep.subr.mxu0 0.0
    %316 = vmatpush1.msra.mxu0 0.0
    %317 = vmatprep.subr.mxu0 0.0
    %318 = vmatpush1.msra.mxu0 0.0
    %319 = vmatprep.subr.mxu0 0.0
    %320 = vmatpush1.msra.mxu0 0.0
    %321 = vmatprep.subr.mxu0 0.0
    %322 = vmatpush1.msra.mxu0 0.0
    %323 = vmatprep.mubr.f32.mxu0 0.0
    %324 = vmatmul.mubr.f32.gmra.mrb[0].mxu0 %v254
    %v325 = vpop.f32.mrb[0].mxu0
    %v326 = vadd.f32 0.0, %v325
    %v327 = vpop.f32.mrb[0].mxu0
    %328 = vmatprep.mubr.f32.mxu0 0.0
    %329 = vmatmul.mubr.f32.gmra.mrb[0].mxu0 %v257
    %v330 = vpop.f32.mrb[0].mxu0
    %v331 = vadd.f32 0.0, %v330
    %v332 = vpop.f32.mrb[0].mxu0
    %333 = vdwg.mxu0
    %334 = vrot.lane.b32.xlu0 %v124, 120
    %v335 = vpop.permute.xlu0 %334
    %336 = vrot.lane.b32.xlu0 %v129, 120
    %v337 = vpop.permute.xlu0 %336
    %338 = vrot.lane.b32.xlu0 %v124, 88
    %v339 = vpop.permute.xlu0 %338
    %340 = vrot.lane.b32.xlu0 %v129, 88
    %v341 = vpop.permute.xlu0 %340
    %v342 = vsel %vm140, %v335, 0
    %v344 = vsel %vm140, %v337, 0
    %v346 = vsel %vm140, %v339, 0
    %v348 = vsel %vm140, %v341, 0
    %350 = vmatprep.subr.mxu0 0.0
    %351 = vmatpush1.xpose.msra.mxu0 %v346
    %352 = vmatprep.subr.mxu0 0.0
    %353 = vmatpush1.xpose.msra.mxu0 %v348
    %354 = vmatprep.subr.mxu0 0.0
    %355 = vmatpush1.xpose.msra.mxu0 0.0
    %356 = vmatprep.subr.mxu0 0.0
    %357 = vmatpush1.xpose.msra.mxu0 0.0
    %358 = vmatprep.subr.mxu0 0.0
    %359 = vmatpush1.xpose.msra.mxu0 0.0
    %360 = vmatprep.subr.mxu0 0.0
    %361 = vmatpush1.xpose.msra.mxu0 0.0
    %362 = vmatprep.subr.mxu0 0.0
    %363 = vmatpush1.xpose.msra.mxu0 0.0
    %364 = vmatprep.subr.mxu0 0.0
    %365 = vmatpush1.xpose.msra.mxu0 0.0
    %366 = vmatprep.subr.mxu0 0.0
    %367 = vmatpush1.xpose.msra.mxu0 0.0
    %368 = vmatprep.subr.mxu0 0.0
    %369 = vmatpush1.xpose.msra.mxu0 0.0
    %370 = vmatprep.subr.mxu0 0.0
    %371 = vmatpush1.xpose.msra.mxu0 0.0
    %372 = vmatprep.subr.mxu0 0.0
    %373 = vmatpush1.xpose.msra.mxu0 0.0
    %374 = vmatprep.subr.mxu0 0.0
    %375 = vmatpush1.xpose.msra.mxu0 0.0
    %376 = vmatprep.subr.mxu0 0.0
    %377 = vmatpush1.xpose.msra.mxu0 0.0
    %378 = vmatprep.subr.mxu0 0.0
    %379 = vmatpush1.xpose.msra.mxu0 0.0
    %380 = vmatprep.subr.mxu0 0.0
    %381 = vmatpush1.xpose.msra.mxu0 0.0
    %382 = vmatprep.subr.mxu0 0.0
    %383 = vmatpush1.xpose.msra.mxu0 0.0
    %384 = vmatprep.subr.mxu0 0.0
    %385 = vmatpush1.xpose.msra.mxu0 0.0
    %386 = vmatprep.subr.mxu0 0.0
    %387 = vmatpush1.xpose.msra.mxu0 0.0
    %388 = vmatprep.subr.mxu0 0.0
    %389 = vmatpush1.xpose.msra.mxu0 0.0
    %390 = vmatprep.subr.mxu0 0.0
    %391 = vmatpush1.xpose.msra.mxu0 0.0
    %392 = vmatprep.subr.mxu0 0.0
    %393 = vmatpush1.xpose.msra.mxu0 0.0
    %394 = vmatprep.subr.mxu0 0.0
    %395 = vmatpush1.xpose.msra.mxu0 0.0
    %396 = vmatprep.subr.mxu0 0.0
    %397 = vmatpush1.xpose.msra.mxu0 0.0
    %398 = vmatprep.subr.mxu0 0.0
    %399 = vmatpush1.xpose.msra.mxu0 0.0
    %400 = vmatprep.subr.mxu0 0.0
    %401 = vmatpush1.xpose.msra.mxu0 0.0
    %402 = vmatprep.subr.mxu0 0.0
    %403 = vmatpush1.xpose.msra.mxu0 0.0
    %404 = vmatprep.subr.mxu0 0.0
    %405 = vmatpush1.xpose.msra.mxu0 0.0
    %406 = vmatprep.subr.mxu0 0.0
    %407 = vmatpush1.xpose.msra.mxu0 0.0
    %408 = vmatprep.subr.mxu0 0.0
    %409 = vmatpush1.xpose.msra.mxu0 0.0
    %410 = vmatprep.subr.mxu0 0.0
    %411 = vmatpush1.xpose.msra.mxu0 0.0
    %412 = vmatprep.subr.mxu0 0.0
    %413 = vmatpush1.xpose.msra.mxu0 0.0
    %414 = vmatprep.mubr.f32.mxu0 0.0
    %415 = vmatmul.mubr.f32.gmra.mrb[0].mxu0 %v342
    %v416 = vpop.f32.mrb[0].mxu0
    %v417 = vadd.f32 %v132, %v416
    %v418 = vpop.f32.mrb[0].mxu0
    %419 = vmatprep.mubr.f32.mxu0 0.0
    %420 = vmatmul.mubr.f32.gmra.mrb[0].mxu0 %v344
    %v421 = vpop.f32.mrb[0].mxu0
    %v422 = vadd.f32 %v133, %v421
    %v423 = vpop.f32.mrb[0].mxu0
    %424 = vdwg.mxu0
    %v425 = vsel %vm224, %v417, -inf
    %426 = vmax.xlane.f32.xlu0 %v425
    %v427 = vpop.xlane.xlu0 %426
    %v428 = vsel %vm224, %v422, -inf
    %429 = vmax.xlane.f32.xlu0 %v428
    %v430 = vpop.xlane.xlu0 %429
    %v431 = vsub.f32 %v417, %v427
    %v432 = vsub.f32 %v422, %v430
    %v433 = vmul.f32 %v431, 1.442695
    %v434 = vpow.pop %v433
    %v435 = vmul.f32 %v432, 1.442695
    %v436 = vpow.pop %v435
    %v437 = vsel %vm224, %v434, 0.0
    %438 = vadd.xlane.f32.xlu0 %v437
    %v439 = vpop.xlane.xlu0 %438
    %v440 = vsel %vm224, %v436, 0.0
    %441 = vadd.xlane.f32.xlu0 %v440
    %v442 = vpop.xlane.xlu0 %441
    %v443 = vrcp.pop %v439
    %v444 = vrcp.pop %v442
    %v445 = vmul.f32 %v434, %v443
    %v446 = vmul.f32 %v436, %v444
    %447 = vrot.lane.b32.xlu0 %v124, 56
    %v448 = vpop.permute.xlu0 %447
    %449 = vrot.lane.b32.xlu0 %v129, 56
    %v450 = vpop.permute.xlu0 %449
    %v454 = vsel %vm224, %v445, 0
    %v457 = vsel %vm224, %v446, 0
    %459 = vmatprep.subr.mxu0 0.0
    %460 = vmatpush1.msra.mxu0 %v448
    %461 = vmatprep.subr.mxu0 0.0
    %462 = vmatpush1.msra.mxu0 %v450
    %463 = vmatprep.subr.mxu0 0.0
    %464 = vmatpush1.msra.mxu0 0.0
    %465 = vmatprep.subr.mxu0 0.0
    %466 = vmatpush1.msra.mxu0 0.0
    %467 = vmatprep.subr.mxu0 0.0
    %468 = vmatpush1.msra.mxu0 0.0
    %469 = vmatprep.subr.mxu0 0.0
    %470 = vmatpush1.msra.mxu0 0.0
    %471 = vmatprep.subr.mxu0 0.0
    %472 = vmatpush1.msra.mxu0 0.0
    %473 = vmatprep.subr.mxu0 0.0
    %474 = vmatpush1.msra.mxu0 0.0
    %475 = vmatprep.subr.mxu0 0.0
    %476 = vmatpush1.msra.mxu0 0.0
    %477 = vmatprep.subr.mxu0 0.0
    %478 = vmatpush1.msra.mxu0 0.0
    %479 = vmatprep.subr.mxu0 0.0
    %480 = vmatpush1.msra.mxu0 0.0
    %481 = vmatprep.subr.mxu0 0.0
    %482 = vmatpush1.msra.mxu0 0.0
    %483 = vmatprep.subr.mxu0 0.0
    %484 = vmatpush1.msra.mxu0 0.0
    %485 = vmatprep.subr.mxu0 0.0
    %486 = vmatpush1.msra.mxu0 0.0
    %487 = vmatprep.subr.mxu0 0.0
    %488 = vmatpush1.msra.mxu0 0.0
    %489 = vmatprep.subr.mxu0 0.0
    %490 = vmatpush1.msra.mxu0 0.0
    %491 = vmatprep.subr.mxu0 0.0
    %492 = vmatpush1.msra.mxu0 0.0
    %493 = vmatprep.subr.mxu0 0.0
    %494 = vmatpush1.msra.mxu0 0.0
    %495 = vmatprep.subr.mxu0 0.0
    %496 = vmatpush1.msra.mxu0 0.0
    %497 = vmatprep.subr.mxu0 0.0
    %498 = vmatpush1.msra.mxu0 0.0
    %499 = vmatprep.subr.mxu0 0.0
    %500 = vmatpush1.msra.mxu0 0.0
    %501 = vmatprep.subr.mxu0 0.0
    %502 = vmatpush1.msra.mxu0 0.0
    %503 = vmatprep.subr.mxu0 0.0
    %504 = vmatpush1.msra.mxu0 0.0
    %505 = vmatprep.subr.mxu0 0.0
    %506 = vmatpush1.msra.mxu0 0.0
    %507 = vmatprep.subr.mxu0 0.0
    %508 = vmatpush1.msra.mxu0 0.0
    %509 = vmatprep.subr.mxu0 0.0
    %510 = vmatpush1.msra.mxu0 0.0
    %511 = vmatprep.subr.mxu0 0.0
    %512 = vmatpush1.msra.mxu0 0.0
    %513 = vmatprep.subr.mxu0 0.0
    %514 = vmatpush1.msra.mxu0 0.0
    %515 = vmatprep.subr.mxu0 0.0
    %516 = vmatpush1.msra.mxu0 0.0
    %517 = vmatprep.subr.mxu0 0.0
    %518 = vmatpush1.msra.mxu0 0.0
    %519 = vmatprep.subr.mxu0 0.0
    %520 = vmatpush1.msra.mxu0 0.0
    %521 = vmatprep.subr.mxu0 0.0
    %522 = vmatpush1.msra.mxu0 0.0
    %523 = vmatprep.mubr.f32.mxu0 0.0
    %524 = vmatmul.mubr.f32.gmra.mrb[0].mxu0 %v454
    %v525 = vpop.f32.mrb[0].mxu0
    %v526 = vadd.f32 0.0, %v525
    %v527 = vpop.f32.mrb[0].mxu0
    %528 = vmatprep.mubr.f32.mxu0 0.0
    %529 = vmatmul.mubr.f32.gmra.mrb[0].mxu0 %v457
    %v530 = vpop.f32.mrb[0].mxu0
    %v531 = vadd.f32 0.0, %v530
    %v532 = vpop.f32.mrb[0].mxu0
    %533 = vdwg.mxu0
    %534 = vrot.lane.b32.xlu0 %v124, 112
    %v535 = vpop.permute.xlu0 %534
    %536 = vrot.lane.b32.xlu0 %v129, 112
    %v537 = vpop.permute.xlu0 %536
    %538 = vrot.lane.b32.xlu0 %v124, 80
    %v539 = vpop.permute.xlu0 %538
    %540 = vrot.lane.b32.xlu0 %v129, 80
    %v541 = vpop.permute.xlu0 %540
    %v542 = vsel %vm140, %v535, 0
    %v544 = vsel %vm140, %v537, 0
    %v546 = vsel %vm140, %v539, 0
    %v548 = vsel %vm140, %v541, 0
    %550 = vmatprep.subr.mxu0 0.0
    %551 = vmatpush1.xpose.msra.mxu0 %v546
    %552 = vmatprep.subr.mxu0 0.0
    %553 = vmatpush1.xpose.msra.mxu0 %v548
    %554 = vmatprep.subr.mxu0 0.0
    %555 = vmatpush1.xpose.msra.mxu0 0.0
    %556 = vmatprep.subr.mxu0 0.0
    %557 = vmatpush1.xpose.msra.mxu0 0.0
    %558 = vmatprep.subr.mxu0 0.0
    %559 = vmatpush1.xpose.msra.mxu0 0.0
    %560 = vmatprep.subr.mxu0 0.0
    %561 = vmatpush1.xpose.msra.mxu0 0.0
    %562 = vmatprep.subr.mxu0 0.0
    %563 = vmatpush1.xpose.msra.mxu0 0.0
    %564 = vmatprep.subr.mxu0 0.0
    %565 = vmatpush1.xpose.msra.mxu0 0.0
    %566 = vmatprep.subr.mxu0 0.0
    %567 = vmatpush1.xpose.msra.mxu0 0.0
    %568 = vmatprep.subr.mxu0 0.0
    %569 = vmatpush1.xpose.msra.mxu0 0.0
    %570 = vmatprep.subr.mxu0 0.0
    %571 = vmatpush1.xpose.msra.mxu0 0.0
    %572 = vmatprep.subr.mxu0 0.0
    %573 = vmatpush1.xpose.msra.mxu0 0.0
    %574 = vmatprep.subr.mxu0 0.0
    %575 = vmatpush1.xpose.msra.mxu0 0.0
    %576 = vmatprep.subr.mxu0 0.0
    %577 = vmatpush1.xpose.msra.mxu0 0.0
    %578 = vmatprep.subr.mxu0 0.0
    %579 = vmatpush1.xpose.msra.mxu0 0.0
    %580 = vmatprep.subr.mxu0 0.0
    %581 = vmatpush1.xpose.msra.mxu0 0.0
    %582 = vmatprep.subr.mxu0 0.0
    %583 = vmatpush1.xpose.msra.mxu0 0.0
    %584 = vmatprep.subr.mxu0 0.0
    %585 = vmatpush1.xpose.msra.mxu0 0.0
    %586 = vmatprep.subr.mxu0 0.0
    %587 = vmatpush1.xpose.msra.mxu0 0.0
    %588 = vmatprep.subr.mxu0 0.0
    %589 = vmatpush1.xpose.msra.mxu0 0.0
    %590 = vmatprep.subr.mxu0 0.0
    %591 = vmatpush1.xpose.msra.mxu0 0.0
    %592 = vmatprep.subr.mxu0 0.0
    %593 = vmatpush1.xpose.msra.mxu0 0.0
    %594 = vmatprep.subr.mxu0 0.0
    %595 = vmatpush1.xpose.msra.mxu0 0.0
    %596 = vmatprep.subr.mxu0 0.0
    %597 = vmatpush1.xpose.msra.mxu0 0.0
    %598 = vmatprep.subr.mxu0 0.0
    %599 = vmatpush1.xpose.msra.mxu0 0.0
    %600 = vmatprep.subr.mxu0 0.0
    %601 = vmatpush1.xpose.msra.mxu0 0.0
    %602 = vmatprep.subr.mxu0 0.0
    %603 = vmatpush1.xpose.msra.mxu0 0.0
    %604 = vmatprep.subr.mxu0 0.0
    %605 = vmatpush1.xpose.msra.mxu0 0.0
    %606 = vmatprep.subr.mxu0 0.0
    %607 = vmatpush1.xpose.msra.mxu0 0.0
    %608 = vmatprep.subr.mxu0 0.0
    %609 = vmatpush1.xpose.msra.mxu0 0.0
    %610 = vmatprep.subr.mxu0 0.0
    %611 = vmatpush1.xpose.msra.mxu0 0.0
    %612 = vmatprep.subr.mxu0 0.0
    %613 = vmatpush1.xpose.msra.mxu0 0.0
    %614 = vmatprep.mubr.f32.mxu0 0.0
    %615 = vmatmul.mubr.f32.gmra.mrb[0].mxu0 %v542
    %v616 = vpop.f32.mrb[0].mxu0
    %v617 = vadd.f32 %v132, %v616
    %v618 = vpop.f32.mrb[0].mxu0
    %619 = vmatprep.mubr.f32.mxu0 0.0
    %620 = vmatmul.mubr.f32.gmra.mrb[0].mxu0 %v544
    %v621 = vpop.f32.mrb[0].mxu0
    %v622 = vadd.f32 %v133, %v621
    %v623 = vpop.f32.mrb[0].mxu0
    %624 = vdwg.mxu0
    %v625 = vsel %vm224, %v617, -inf
    %626 = vmax.xlane.f32.xlu0 %v625
    %v627 = vpop.xlane.xlu0 %626
    %v628 = vsel %vm224, %v622, -inf
    %629 = vmax.xlane.f32.xlu0 %v628
    %v630 = vpop.xlane.xlu0 %629
    %v631 = vsub.f32 %v617, %v627
    %v632 = vsub.f32 %v622, %v630
    %v633 = vmul.f32 %v631, 1.442695
    %v634 = vpow.pop %v633
    %v635 = vmul.f32 %v632, 1.442695
    %v636 = vpow.pop %v635
    %v637 = vsel %vm224, %v634, 0.0
    %638 = vadd.xlane.f32.xlu0 %v637
    %v639 = vpop.xlane.xlu0 %638
    %v640 = vsel %vm224, %v636, 0.0
    %641 = vadd.xlane.f32.xlu0 %v640
    %v642 = vpop.xlane.xlu0 %641
    %v643 = vrcp.pop %v639
    %v644 = vrcp.pop %v642
    %v645 = vmul.f32 %v634, %v643
    %v646 = vmul.f32 %v636, %v644
    %647 = vrot.lane.b32.xlu0 %v124, 48
    %v648 = vpop.permute.xlu0 %647
    %649 = vrot.lane.b32.xlu0 %v129, 48
    %v650 = vpop.permute.xlu0 %649
    %v654 = vsel %vm224, %v645, 0
    %v657 = vsel %vm224, %v646, 0
    %659 = vmatprep.subr.mxu0 0.0
    %660 = vmatpush1.msra.mxu0 %v648
    %661 = vmatprep.subr.mxu0 0.0
    %662 = vmatpush1.msra.mxu0 %v650
    %663 = vmatprep.subr.mxu0 0.0
    %664 = vmatpush1.msra.mxu0 0.0
    %665 = vmatprep.subr.mxu0 0.0
    %666 = vmatpush1.msra.mxu0 0.0
    %667 = vmatprep.subr.mxu0 0.0
    %668 = vmatpush1.msra.mxu0 0.0
    %669 = vmatprep.subr.mxu0 0.0
    %670 = vmatpush1.msra.mxu0 0.0
    %671 = vmatprep.subr.mxu0 0.0
    %672 = vmatpush1.msra.mxu0 0.0
    %673 = vmatprep.subr.mxu0 0.0
    %674 = vmatpush1.msra.mxu0 0.0
    %675 = vmatprep.subr.mxu0 0.0
    %676 = vmatpush1.msra.mxu0 0.0
    %677 = vmatprep.subr.mxu0 0.0
    %678 = vmatpush1.msra.mxu0 0.0
    %679 = vmatprep.subr.mxu0 0.0
    %680 = vmatpush1.msra.mxu0 0.0
    %681 = vmatprep.subr.mxu0 0.0
    %682 = vmatpush1.msra.mxu0 0.0
    %683 = vmatprep.subr.mxu0 0.0
    %684 = vmatpush1.msra.mxu0 0.0
    %685 = vmatprep.subr.mxu0 0.0
    %686 = vmatpush1.msra.mxu0 0.0
    %687 = vmatprep.subr.mxu0 0.0
    %688 = vmatpush1.msra.mxu0 0.0
    %689 = vmatprep.subr.mxu0 0.0
    %690 = vmatpush1.msra.mxu0 0.0
    %691 = vmatprep.subr.mxu0 0.0
    %692 = vmatpush1.msra.mxu0 0.0
    %693 = vmatprep.subr.mxu0 0.0
    %694 = vmatpush1.msra.mxu0 0.0
    %695 = vmatprep.subr.mxu0 0.0
    %696 = vmatpush1.msra.mxu0 0.0
    %697 = vmatprep.subr.mxu0 0.0
    %698 = vmatpush1.msra.mxu0 0.0
    %699 = vmatprep.subr.mxu0 0.0
    %700 = vmatpush1.msra.mxu0 0.0
    %701 = vmatprep.subr.mxu0 0.0
    %702 = vmatpush1.msra.mxu0 0.0
    %703 = vmatprep.subr.mxu0 0.0
    %704 = vmatpush1.msra.mxu0 0.0
    %705 = vmatprep.subr.mxu0 0.0
    %706 = vmatpush1.msra.mxu0 0.0
    %707 = vmatprep.subr.mxu0 0.0
    %708 = vmatpush1.msra.mxu0 0.0
    %709 = vmatprep.subr.mxu0 0.0
    %710 = vmatpush1.msra.mxu0 0.0
    %711 = vmatprep.subr.mxu0 0.0
    %712 = vmatpush1.msra.mxu0 0.0
    %713 = vmatprep.subr.mxu0 0.0
    %714 = vmatpush1.msra.mxu0 0.0
    %715 = vmatprep.subr.mxu0 0.0
    %716 = vmatpush1.msra.mxu0 0.0
    %717 = vmatprep.subr.mxu0 0.0
    %718 = vmatpush1.msra.mxu0 0.0
    %719 = vmatprep.subr.mxu0 0.0
    %720 = vmatpush1.msra.mxu0 0.0
    %721 = vmatprep.subr.mxu0 0.0
    %722 = vmatpush1.msra.mxu0 0.0
    %723 = vmatprep.mubr.f32.mxu0 0.0
    %724 = vmatmul.mubr.f32.gmra.mrb[0].mxu0 %v654
    %v725 = vpop.f32.mrb[0].mxu0
    %v726 = vadd.f32 0.0, %v725
    %v727 = vpop.f32.mrb[0].mxu0
    %728 = vmatprep.mubr.f32.mxu0 0.0
    %729 = vmatmul.mubr.f32.gmra.mrb[0].mxu0 %v657
    %v730 = vpop.f32.mrb[0].mxu0
    %v731 = vadd.f32 0.0, %v730
    %v732 = vpop.f32.mrb[0].mxu0
    %733 = vdwg.mxu0
    %734 = vrot.lane.b32.xlu0 %v124, 104
    %v735 = vpop.permute.xlu0 %734
    %736 = vrot.lane.b32.xlu0 %v129, 104
    %v737 = vpop.permute.xlu0 %736
    %738 = vrot.lane.b32.xlu0 %v124, 72
    %v739 = vpop.permute.xlu0 %738
    %740 = vrot.lane.b32.xlu0 %v129, 72
    %v741 = vpop.permute.xlu0 %740
    %v742 = vsel %vm140, %v735, 0
    %v744 = vsel %vm140, %v737, 0
    %v746 = vsel %vm140, %v739, 0
    %v748 = vsel %vm140, %v741, 0
    %750 = vmatprep.subr.mxu0 0.0
    %751 = vmatpush1.xpose.msra.mxu0 %v746
    %752 = vmatprep.subr.mxu0 0.0
    %753 = vmatpush1.xpose.msra.mxu0 %v748
    %754 = vmatprep.subr.mxu0 0.0
    %755 = vmatpush1.xpose.msra.mxu0 0.0
    %756 = vmatprep.subr.mxu0 0.0
    %757 = vmatpush1.xpose.msra.mxu0 0.0
    %758 = vmatprep.subr.mxu0 0.0
    %759 = vmatpush1.xpose.msra.mxu0 0.0
    %760 = vmatprep.subr.mxu0 0.0
    %761 = vmatpush1.xpose.msra.mxu0 0.0
    %762 = vmatprep.subr.mxu0 0.0
    %763 = vmatpush1.xpose.msra.mxu0 0.0
    %764 = vmatprep.subr.mxu0 0.0
    %765 = vmatpush1.xpose.msra.mxu0 0.0
    %766 = vmatprep.subr.mxu0 0.0
    %767 = vmatpush1.xpose.msra.mxu0 0.0
    %768 = vmatprep.subr.mxu0 0.0
    %769 = vmatpush1.xpose.msra.mxu0 0.0
    %770 = vmatprep.subr.mxu0 0.0
    %771 = vmatpush1.xpose.msra.mxu0 0.0
    %772 = vmatprep.subr.mxu0 0.0
    %773 = vmatpush1.xpose.msra.mxu0 0.0
    %774 = vmatprep.subr.mxu0 0.0
    %775 = vmatpush1.xpose.msra.mxu0 0.0
    %776 = vmatprep.subr.mxu0 0.0
    %777 = vmatpush1.xpose.msra.mxu0 0.0
    %778 = vmatprep.subr.mxu0 0.0
    %779 = vmatpush1.xpose.msra.mxu0 0.0
    %780 = vmatprep.subr.mxu0 0.0
    %781 = vmatpush1.xpose.msra.mxu0 0.0
    %782 = vmatprep.subr.mxu0 0.0
    %783 = vmatpush1.xpose.msra.mxu0 0.0
    %784 = vmatprep.subr.mxu0 0.0
    %785 = vmatpush1.xpose.msra.mxu0 0.0
    %786 = vmatprep.subr.mxu0 0.0
    %787 = vmatpush1.xpose.msra.mxu0 0.0
    %788 = vmatprep.subr.mxu0 0.0
    %789 = vmatpush1.xpose.msra.mxu0 0.0
    %790 = vmatprep.subr.mxu0 0.0
    %791 = vmatpush1.xpose.msra.mxu0 0.0
    %792 = vmatprep.subr.mxu0 0.0
    %793 = vmatpush1.xpose.msra.mxu0 0.0
    %794 = vmatprep.subr.mxu0 0.0
    %795 = vmatpush1.xpose.msra.mxu0 0.0
    %796 = vmatprep.subr.mxu0 0.0
    %797 = vmatpush1.xpose.msra.mxu0 0.0
    %798 = vmatprep.subr.mxu0 0.0
    %799 = vmatpush1.xpose.msra.mxu0 0.0
    %800 = vmatprep.subr.mxu0 0.0
    %801 = vmatpush1.xpose.msra.mxu0 0.0
    %802 = vmatprep.subr.mxu0 0.0
    %803 = vmatpush1.xpose.msra.mxu0 0.0
    %804 = vmatprep.subr.mxu0 0.0
    %805 = vmatpush1.xpose.msra.mxu0 0.0
    %806 = vmatprep.subr.mxu0 0.0
    %807 = vmatpush1.xpose.msra.mxu0 0.0
    %808 = vmatprep.subr.mxu0 0.0
    %809 = vmatpush1.xpose.msra.mxu0 0.0
    %810 = vmatprep.subr.mxu0 0.0
    %811 = vmatpush1.xpose.msra.mxu0 0.0
    %812 = vmatprep.subr.mxu0 0.0
    %813 = vmatpush1.xpose.msra.mxu0 0.0
    %814 = vmatprep.mubr.f32.mxu0 0.0
    %815 = vmatmul.mubr.f32.gmra.mrb[0].mxu0 %v742
    %v816 = vpop.f32.mrb[0].mxu0
    %v817 = vadd.f32 %v132, %v816
    %v818 = vpop.f32.mrb[0].mxu0
    %819 = vmatprep.mubr.f32.mxu0 0.0
    %820 = vmatmul.mubr.f32.gmra.mrb[0].mxu0 %v744
    %v821 = vpop.f32.mrb[0].mxu0
    %v822 = vadd.f32 %v133, %v821
    %v823 = vpop.f32.mrb[0].mxu0
    %824 = vdwg.mxu0
    %v825 = vsel %vm224, %v817, -inf
    %826 = vmax.xlane.f32.xlu0 %v825
    %v827 = vpop.xlane.xlu0 %826
    %v828 = vsel %vm224, %v822, -inf
    %829 = vmax.xlane.f32.xlu0 %v828
    %v830 = vpop.xlane.xlu0 %829
    %v831 = vsub.f32 %v817, %v827
    %v832 = vsub.f32 %v822, %v830
    %v833 = vmul.f32 %v831, 1.442695
    %v834 = vpow.pop %v833
    %v835 = vmul.f32 %v832, 1.442695
    %v836 = vpow.pop %v835
    %v837 = vsel %vm224, %v834, 0.0
    %838 = vadd.xlane.f32.xlu0 %v837
    %v839 = vpop.xlane.xlu0 %838
    %v840 = vsel %vm224, %v836, 0.0
    %841 = vadd.xlane.f32.xlu0 %v840
    %v842 = vpop.xlane.xlu0 %841
    %v843 = vrcp.pop %v839
    %v844 = vrcp.pop %v842
    %v845 = vmul.f32 %v834, %v843
    %v846 = vmul.f32 %v836, %v844
    %847 = vrot.lane.b32.xlu0 %v124, 40
    %v848 = vpop.permute.xlu0 %847
    %849 = vrot.lane.b32.xlu0 %v129, 40
    %v850 = vpop.permute.xlu0 %849
    %v854 = vsel %vm224, %v845, 0
    %v857 = vsel %vm224, %v846, 0
    %859 = vmatprep.subr.mxu0 0.0
    %860 = vmatpush1.msra.mxu0 %v848
    %861 = vmatprep.subr.mxu0 0.0
    %862 = vmatpush1.msra.mxu0 %v850
    %863 = vmatprep.subr.mxu0 0.0
    %864 = vmatpush1.msra.mxu0 0.0
    %865 = vmatprep.subr.mxu0 0.0
    %866 = vmatpush1.msra.mxu0 0.0
    %867 = vmatprep.subr.mxu0 0.0
    %868 = vmatpush1.msra.mxu0 0.0
    %869 = vmatprep.subr.mxu0 0.0
    %870 = vmatpush1.msra.mxu0 0.0
    %871 = vmatprep.subr.mxu0 0.0
    %872 = vmatpush1.msra.mxu0 0.0
    %873 = vmatprep.subr.mxu0 0.0
    %874 = vmatpush1.msra.mxu0 0.0
    %875 = vmatprep.subr.mxu0 0.0
    %876 = vmatpush1.msra.mxu0 0.0
    %877 = vmatprep.subr.mxu0 0.0
    %878 = vmatpush1.msra.mxu0 0.0
    %879 = vmatprep.subr.mxu0 0.0
    %880 = vmatpush1.msra.mxu0 0.0
    %881 = vmatprep.subr.mxu0 0.0
    %882 = vmatpush1.msra.mxu0 0.0
    %883 = vmatprep.subr.mxu0 0.0
    %884 = vmatpush1.msra.mxu0 0.0
    %885 = vmatprep.subr.mxu0 0.0
    %886 = vmatpush1.msra.mxu0 0.0
    %887 = vmatprep.subr.mxu0 0.0
    %888 = vmatpush1.msra.mxu0 0.0
    %889 = vmatprep.subr.mxu0 0.0
    %890 = vmatpush1.msra.mxu0 0.0
    %891 = vmatprep.subr.mxu0 0.0
    %892 = vmatpush1.msra.mxu0 0.0
    %893 = vmatprep.subr.mxu0 0.0
    %894 = vmatpush1.msra.mxu0 0.0
    %895 = vmatprep.subr.mxu0 0.0
    %896 = vmatpush1.msra.mxu0 0.0
    %897 = vmatprep.subr.mxu0 0.0
    %898 = vmatpush1.msra.mxu0 0.0
    %899 = vmatprep.subr.mxu0 0.0
    %900 = vmatpush1.msra.mxu0 0.0
    %901 = vmatprep.subr.mxu0 0.0
    %902 = vmatpush1.msra.mxu0 0.0
    %903 = vmatprep.subr.mxu0 0.0
    %904 = vmatpush1.msra.mxu0 0.0
    %905 = vmatprep.subr.mxu0 0.0
    %906 = vmatpush1.msra.mxu0 0.0
    %907 = vmatprep.subr.mxu0 0.0
    %908 = vmatpush1.msra.mxu0 0.0
    %909 = vmatprep.subr.mxu0 0.0
    %910 = vmatpush1.msra.mxu0 0.0
    %911 = vmatprep.subr.mxu0 0.0
    %912 = vmatpush1.msra.mxu0 0.0
    %913 = vmatprep.subr.mxu0 0.0
    %914 = vmatpush1.msra.mxu0 0.0
    %915 = vmatprep.subr.mxu0 0.0
    %916 = vmatpush1.msra.mxu0 0.0
    %917 = vmatprep.subr.mxu0 0.0
    %918 = vmatpush1.msra.mxu0 0.0
    %919 = vmatprep.subr.mxu0 0.0
    %920 = vmatpush1.msra.mxu0 0.0
    %921 = vmatprep.subr.mxu0 0.0
    %922 = vmatpush1.msra.mxu0 0.0
    %923 = vmatprep.mubr.f32.mxu0 0.0
    %924 = vmatmul.mubr.f32.gmra.mrb[0].mxu0 %v854
    %v925 = vpop.f32.mrb[0].mxu0
    %v926 = vadd.f32 0.0, %v925
    %v927 = vpop.f32.mrb[0].mxu0
    %928 = vmatprep.mubr.f32.mxu0 0.0
    %929 = vmatmul.mubr.f32.gmra.mrb[0].mxu0 %v857
    %v930 = vpop.f32.mrb[0].mxu0
    %v931 = vadd.f32 0.0, %v930
    %v932 = vpop.f32.mrb[0].mxu0
    %933 = vdwg.mxu0
    %936 = vrot.lane.b32.xlu0 %v526, 8
    %v937 = vpop.permute.xlu0 %936
    %938 = vrot.lane.b32.xlu0 %v531, 8
    %v939 = vpop.permute.xlu0 %938
    %944 = vrot.lane.b32.xlu0 %v726, 16
    %v945 = vpop.permute.xlu0 %944
    %946 = vrot.lane.b32.xlu0 %v731, 16
    %v947 = vpop.permute.xlu0 %946
    %952 = vrot.lane.b32.xlu0 %v926, 24
    %v953 = vpop.permute.xlu0 %952
    %954 = vrot.lane.b32.xlu0 %v931, 24
    %v955 = vpop.permute.xlu0 %954
    %v958 = vsel %vm140, %v326, %v937
    %v959 = vsel %vm140, %v331, %v939
    %v960 = vsel %vm224, %v958, %v945
    %v961 = vsel %vm224, %v959, %v947
    %vm962 = vcmask 195584
    %v963 = vsel %vm962, %v960, %v953
    %v964 = vsel %vm962, %v961, %v955
    %v965 = vld [vmem:[%s3] sm:$0xff]
    %v966 = vld [vmem:[%s3 + $0x8] sm:$0xff]
    %v967 = vld [vmem:[%s3 + $0x10] sm:$0xff]
    %v968 = vld [vmem:[%s3 + $0x18] sm:$0xff]
    %v969 = vlaneseq
    %v970 = vshrl.u32 %v969, 7
    %v971 = vsub.s32 1, %v970
    %v972 = vrot.slane %v41, %v971
    %v974 = vsel %vm50, %v963, 0
    %v977 = vsel %vm50, %v964, 0
    %979 = vmatprep.subr.mxu0 0.0
    %980 = vmatpush1.msra.mxu0 %v965
    %981 = vmatprep.subr.mxu0 0.0
    %982 = vmatpush1.msra.mxu0 %v966
    %983 = vmatprep.subr.mxu0 0.0
    %984 = vmatpush1.msra.mxu0 %v967
    %985 = vmatprep.subr.mxu0 0.0
    %986 = vmatpush1.msra.mxu0 %v968
    %987 = vmatprep.subr.mxu0 0.0
    %988 = vmatpush1.msra.mxu0 0.0
    %989 = vmatprep.subr.mxu0 0.0
    %990 = vmatpush1.msra.mxu0 0.0
    %991 = vmatprep.subr.mxu0 0.0
    %992 = vmatpush1.msra.mxu0 0.0
    %993 = vmatprep.subr.mxu0 0.0
    %994 = vmatpush1.msra.mxu0 0.0
    %995 = vmatprep.subr.mxu0 0.0
    %996 = vmatpush1.msra.mxu0 0.0
    %997 = vmatprep.subr.mxu0 0.0
    %998 = vmatpush1.msra.mxu0 0.0
    %999 = vmatprep.subr.mxu0 0.0
    %1000 = vmatpush1.msra.mxu0 0.0
    %1001 = vmatprep.subr.mxu0 0.0
    %1002 = vmatpush1.msra.mxu0 0.0
    %1003 = vmatprep.subr.mxu0 0.0
    %1004 = vmatpush1.msra.mxu0 0.0
    %1005 = vmatprep.subr.mxu0 0.0
    %1006 = vmatpush1.msra.mxu0 0.0
    %1007 = vmatprep.subr.mxu0 0.0
    %1008 = vmatpush1.msra.mxu0 0.0
    %1009 = vmatprep.subr.mxu0 0.0
    %1010 = vmatpush1.msra.mxu0 0.0
    %1011 = vmatprep.subr.mxu0 0.0
    %1012 = vmatpush1.msra.mxu0 0.0
    %1013 = vmatprep.subr.mxu0 0.0
    %1014 = vmatpush1.msra.mxu0 0.0
    %1015 = vmatprep.subr.mxu0 0.0
    %1016 = vmatpush1.msra.mxu0 0.0
    %1017 = vmatprep.subr.mxu0 0.0
    %1018 = vmatpush1.msra.mxu0 0.0
    %1019 = vmatprep.subr.mxu0 0.0
    %1020 = vmatpush1.msra.mxu0 0.0
    %1021 = vmatprep.subr.mxu0 0.0
    %1022 = vmatpush1.msra.mxu0 0.0
    %1023 = vmatprep.subr.mxu0 0.0
    %1024 = vmatpush1.msra.mxu0 0.0
    %1025 = vmatprep.subr.mxu0 0.0
    %1026 = vmatpush1.msra.mxu0 0.0
    %1027 = vmatprep.subr.mxu0 0.0
    %1028 = vmatpush1.msra.mxu0 0.0
    %1029 = vmatprep.subr.mxu0 0.0
    %1030 = vmatpush1.msra.mxu0 0.0
    %1031 = vmatprep.subr.mxu0 0.0
    %1032 = vmatpush1.msra.mxu0 0.0
    %1033 = vmatprep.subr.mxu0 0.0
    %1034 = vmatpush1.msra.mxu0 0.0
    %1035 = vmatprep.subr.mxu0 0.0
    %1036 = vmatpush1.msra.mxu0 0.0
    %1037 = vmatprep.subr.mxu0 0.0
    %1038 = vmatpush1.msra.mxu0 0.0
    %1039 = vmatprep.subr.mxu0 0.0
    %1040 = vmatpush1.msra.mxu0 0.0
    %1041 = vmatprep.subr.mxu0 0.0
    %1042 = vmatpush1.msra.mxu0 0.0
    %1043 = vmatprep.mubr.f32.mxu0 0.0
    %1044 = vmatmul.mubr.f32.gmra.mrb[0].mxu0 %v974
    %v1045 = vpop.f32.mrb[0].mxu0
    %v1046 = vadd.f32 %v972, %v1045
    %v1047 = vpop.f32.mrb[0].mxu0
    %1048 = vmatprep.mubr.f32.mxu0 0.0
    %1049 = vmatmul.mubr.f32.gmra.mrb[0].mxu0 %v977
    %v1050 = vpop.f32.mrb[0].mxu0
    %v1051 = vadd.f32 %v972, %v1050
    %v1052 = vpop.f32.mrb[0].mxu0
    %1053 = vdwg.mxu0
    %v1054 = vadd.f32 %v1046, %v39
    %v1055 = vadd.f32 %v1051, %v40
    %v1056 = vsel %vm50, %v1054, 0.0
    %1057 = vadd.xlane.f32.xlu0 %v1056
    %v1058 = vpop.xlane.xlu0 %1057
    %v1059 = vsel %vm50, %v1055, 0.0
    %1060 = vadd.xlane.f32.xlu0 %v1059
    %v1061 = vpop.xlane.xlu0 %1060
    %v1062 = vrcp.pop 32.0
    %v1063 = vmul.f32 %v1058, %v1062
    %v1064 = vmul.f32 %v1061, %v1062
    %v1065 = vsub.f32 %v1054, %v1063
    %v1066 = vsub.f32 %v1055, %v1064
    %v1067 = vmul.f32 %v1065, %v1065
    %v1068 = vmul.f32 %v1066, %v1066
    %v1069 = vsel %vm50, %v1067, 0.0
    %1070 = vadd.xlane.f32.xlu0 %v1069
    %v1071 = vpop.xlane.xlu0 %1070
    %v1072 = vsel %vm50, %v1068, 0.0
    %1073 = vadd.xlane.f32.xlu0 %v1072
    %v1074 = vpop.xlane.xlu0 %1073
    %v1075 = vmul.f32 %v1071, %v1062
    %v1076 = vmul.f32 %v1074, %v1062
    %v1077 = vadd.f32 %v1075, 1e-12
    %v1078 = vadd.f32 %v1076, 1e-12
    %v1079 = vrsqrt.pop %v1077
    %v1080 = vrsqrt.pop %v1078
    %v1081 = vmul.f32 %v1065, %v1079
    %v1082 = vmul.f32 %v1066, %v1080
    %v1083 = vlaneseq
    %v1084 = vshrl.u32 %v1083, 7
    %v1085 = vsub.s32 2, %v1084
    %v1086 = vrot.slane %v41, %v1085
    %v1087 = vmul.f32 %v1081, %v1086
    %v1088 = vmul.f32 %v1082, %v1086
    %v1089 = vlaneseq
    %v1090 = vshrl.u32 %v1089, 7
    %v1091 = vsub.s32 3, %v1090
    %v1092 = vrot.slane %v41, %v1091
    %v1093 = vadd.f32 %v1087, %v1092
    %v1094 = vadd.f32 %v1088, %v1092
    %v1095 = vld [vmem:[%s4] sm:$0xff]
    %v1096 = vld [vmem:[%s4 + $0x8] sm:$0xff]
    %v1097 = vld [vmem:[%s4 + $0x10] sm:$0xff]
    %v1098 = vld [vmem:[%s4 + $0x18] sm:$0xff]
    %v1099 = vlaneseq
    %v1100 = vshrl.u32 %v1099, 7
    %v1101 = vsub.s32 4, %v1100
    %v1102 = vrot.slane %v41, %v1101
    %v1104 = vsel %vm50, %v1093, 0
    %v1107 = vsel %vm50, %v1094, 0
    %1109 = vmatprep.subr.mxu0 0.0
    %1110 = vmatpush1.msra.mxu0 %v1095
    %1111 = vmatprep.subr.mxu0 0.0
    %1112 = vmatpush1.msra.mxu0 %v1096
    %1113 = vmatprep.subr.mxu0 0.0
    %1114 = vmatpush1.msra.mxu0 %v1097
    %1115 = vmatprep.subr.mxu0 0.0
    %1116 = vmatpush1.msra.mxu0 %v1098
    %1117 = vmatprep.subr.mxu0 0.0
    %1118 = vmatpush1.msra.mxu0 0.0
    %1119 = vmatprep.subr.mxu0 0.0
    %1120 = vmatpush1.msra.mxu0 0.0
    %1121 = vmatprep.subr.mxu0 0.0
    %1122 = vmatpush1.msra.mxu0 0.0
    %1123 = vmatprep.subr.mxu0 0.0
    %1124 = vmatpush1.msra.mxu0 0.0
    %1125 = vmatprep.subr.mxu0 0.0
    %1126 = vmatpush1.msra.mxu0 0.0
    %1127 = vmatprep.subr.mxu0 0.0
    %1128 = vmatpush1.msra.mxu0 0.0
    %1129 = vmatprep.subr.mxu0 0.0
    %1130 = vmatpush1.msra.mxu0 0.0
    %1131 = vmatprep.subr.mxu0 0.0
    %1132 = vmatpush1.msra.mxu0 0.0
    %1133 = vmatprep.subr.mxu0 0.0
    %1134 = vmatpush1.msra.mxu0 0.0
    %1135 = vmatprep.subr.mxu0 0.0
    %1136 = vmatpush1.msra.mxu0 0.0
    %1137 = vmatprep.subr.mxu0 0.0
    %1138 = vmatpush1.msra.mxu0 0.0
    %1139 = vmatprep.subr.mxu0 0.0
    %1140 = vmatpush1.msra.mxu0 0.0
    %1141 = vmatprep.subr.mxu0 0.0
    %1142 = vmatpush1.msra.mxu0 0.0
    %1143 = vmatprep.subr.mxu0 0.0
    %1144 = vmatpush1.msra.mxu0 0.0
    %1145 = vmatprep.subr.mxu0 0.0
    %1146 = vmatpush1.msra.mxu0 0.0
    %1147 = vmatprep.subr.mxu0 0.0
    %1148 = vmatpush1.msra.mxu0 0.0
    %1149 = vmatprep.subr.mxu0 0.0
    %1150 = vmatpush1.msra.mxu0 0.0
    %1151 = vmatprep.subr.mxu0 0.0
    %1152 = vmatpush1.msra.mxu0 0.0
    %1153 = vmatprep.subr.mxu0 0.0
    %1154 = vmatpush1.msra.mxu0 0.0
    %1155 = vmatprep.subr.mxu0 0.0
    %1156 = vmatpush1.msra.mxu0 0.0
    %1157 = vmatprep.subr.mxu0 0.0
    %1158 = vmatpush1.msra.mxu0 0.0
    %1159 = vmatprep.subr.mxu0 0.0
    %1160 = vmatpush1.msra.mxu0 0.0
    %1161 = vmatprep.subr.mxu0 0.0
    %1162 = vmatpush1.msra.mxu0 0.0
    %1163 = vmatprep.subr.mxu0 0.0
    %1164 = vmatpush1.msra.mxu0 0.0
    %1165 = vmatprep.subr.mxu0 0.0
    %1166 = vmatpush1.msra.mxu0 0.0
    %1167 = vmatprep.subr.mxu0 0.0
    %1168 = vmatpush1.msra.mxu0 0.0
    %1169 = vmatprep.subr.mxu0 0.0
    %1170 = vmatpush1.msra.mxu0 0.0
    %1171 = vmatprep.subr.mxu0 0.0
    %1172 = vmatpush1.msra.mxu0 0.0
    %1173 = vmatprep.mubr.f32.mxu0 0.0
    %1174 = vmatmul.mubr.f32.gmra.mrb[0].mxu0 %v1104
    %v1175 = vpop.f32.mrb[0].mxu0
    %v1176 = vadd.f32 %v1102, %v1175
    %v1177 = vpop.f32.mrb[0].mxu0
    %1178 = vmatprep.mubr.f32.mxu0 0.0
    %1179 = vmatmul.mubr.f32.gmra.mrb[0].mxu0 %v1107
    %v1180 = vpop.f32.mrb[0].mxu0
    %v1181 = vadd.f32 %v1102, %v1180
    %v1182 = vpop.f32.mrb[0].mxu0
    %1183 = vdwg.mxu0
    %v1184 = vmul.f32 %v1176, 0.5
    %v1185 = vmul.f32 %v1181, 0.5
    %v1186 = vrcp.pop 1.4142135
    %v1187 = vmul.f32 %v1176, %v1186
    %v1188 = vmul.f32 %v1181, %v1186
    %v1189 = verf.f32.pop %v1187
    %v1190 = verf.f32.pop %v1188
    %v1191 = vadd.f32 %v1189, 1.0
    %v1192 = vadd.f32 %v1190, 1.0
    %v1193 = vmul.f32 %v1184, %v1191
    %v1194 = vmul.f32 %v1185, %v1192
    %v1195 = vld [vmem:[%s5] sm:$0xff]
    %v1196 = vld [vmem:[%s5 + $0x8] sm:$0xff]
    %v1197 = vld [vmem:[%s5 + $0x10] sm:$0xff]
    %v1198 = vld [vmem:[%s5 + $0x18] sm:$0xff]
    %v1199 = vld [vmem:[%s5 + $0x20] sm:$0xff]
    %v1200 = vld [vmem:[%s5 + $0x28] sm:$0xff]
    %v1201 = vld [vmem:[%s5 + $0x30] sm:$0xff]
    %v1202 = vld [vmem:[%s5 + $0x38] sm:$0xff]
    %v1203 = vlaneseq
    %v1204 = vshrl.u32 %v1203, 7
    %v1205 = vsub.s32 5, %v1204
    %v1206 = vrot.slane %v41, %v1205
    %vm1207 = vcmask 523264
    %v1209 = vsel %vm1207, %v1193, 0
    %v1212 = vsel %vm1207, %v1194, 0
    %1214 = vmatprep.subr.mxu0 0.0
    %1215 = vmatpush1.msra.mxu0 %v1195
    %1216 = vmatprep.subr.mxu0 0.0
    %1217 = vmatpush1.msra.mxu0 %v1196
    %1218 = vmatprep.subr.mxu0 0.0
    %1219 = vmatpush1.msra.mxu0 %v1197
    %1220 = vmatprep.subr.mxu0 0.0
    %1221 = vmatpush1.msra.mxu0 %v1198
    %1222 = vmatprep.subr.mxu0 0.0
    %1223 = vmatpush1.msra.mxu0 %v1199
    %1224 = vmatprep.subr.mxu0 0.0
    %1225 = vmatpush1.msra.mxu0 %v1200
    %1226 = vmatprep.subr.mxu0 0.0
    %1227 = vmatpush1.msra.mxu0 %v1201
    %1228 = vmatprep.subr.mxu0 0.0
    %1229 = vmatpush1.msra.mxu0 %v1202
    %1230 = vmatprep.subr.mxu0 0.0
    %1231 = vmatpush1.msra.mxu0 0.0
    %1232 = vmatprep.subr.mxu0 0.0
    %1233 = vmatpush1.msra.mxu0 0.0
    %1234 = vmatprep.subr.mxu0 0.0
    %1235 = vmatpush1.msra.mxu0 0.0
    %1236 = vmatprep.subr.mxu0 0.0
    %1237 = vmatpush1.msra.mxu0 0.0
    %1238 = vmatprep.subr.mxu0 0.0
    %1239 = vmatpush1.msra.mxu0 0.0
    %1240 = vmatprep.subr.mxu0 0.0
    %1241 = vmatpush1.msra.mxu0 0.0
    %1242 = vmatprep.subr.mxu0 0.0
    %1243 = vmatpush1.msra.mxu0 0.0
    %1244 = vmatprep.subr.mxu0 0.0
    %1245 = vmatpush1.msra.mxu0 0.0
    %1246 = vmatprep.subr.mxu0 0.0
    %1247 = vmatpush1.msra.mxu0 0.0
    %1248 = vmatprep.subr.mxu0 0.0
    %1249 = vmatpush1.msra.mxu0 0.0
    %1250 = vmatprep.subr.mxu0 0.0
    %1251 = vmatpush1.msra.mxu0 0.0
    %1252 = vmatprep.subr.mxu0 0.0
    %1253 = vmatpush1.msra.mxu0 0.0
    %1254 = vmatprep.subr.mxu0 0.0
    %1255 = vmatpush1.msra.mxu0 0.0
    %1256 = vmatprep.subr.mxu0 0.0
    %1257 = vmatpush1.msra.mxu0 0.0
    %1258 = vmatprep.subr.mxu0 0.0
    %1259 = vmatpush1.msra.mxu0 0.0
    %1260 = vmatprep.subr.mxu0 0.0
    %1261 = vmatpush1.msra.mxu0 0.0
    %1262 = vmatprep.subr.mxu0 0.0
    %1263 = vmatpush1.msra.mxu0 0.0
    %1264 = vmatprep.subr.mxu0 0.0
    %1265 = vmatpush1.msra.mxu0 0.0
    %1266 = vmatprep.subr.mxu0 0.0
    %1267 = vmatpush1.msra.mxu0 0.0
    %1268 = vmatprep.subr.mxu0 0.0
    %1269 = vmatpush1.msra.mxu0 0.0
    %1270 = vmatprep.subr.mxu0 0.0
    %1271 = vmatpush1.msra.mxu0 0.0
    %1272 = vmatprep.subr.mxu0 0.0
    %1273 = vmatpush1.msra.mxu0 0.0
    %1274 = vmatprep.subr.mxu0 0.0
    %1275 = vmatpush1.msra.mxu0 0.0
    %1276 = vmatprep.subr.mxu0 0.0
    %1277 = vmatpush1.msra.mxu0 0.0
    %1278 = vmatprep.mubr.f32.mxu0 0.0
    %1279 = vmatmul.mubr.f32.gmra.mrb[0].mxu0 %v1209
    %v1280 = vpop.f32.mrb[0].mxu0
    %v1281 = vadd.f32 %v1206, %v1280
    %v1282 = vpop.f32.mrb[0].mxu0
    %1283 = vmatprep.mubr.f32.mxu0 0.0
    %1284 = vmatmul.mubr.f32.gmra.mrb[0].mxu0 %v1212
    %v1285 = vpop.f32.mrb[0].mxu0
    %v1286 = vadd.f32 %v1206, %v1285
    %v1287 = vpop.f32.mrb[0].mxu0
    %1288 = vdwg.mxu0
    %v1289 = vadd.f32 %v1281, %v1093
    %v1290 = vadd.f32 %v1286, %v1094
    %v1291 = vsel %vm50, %v1289, 0.0
    %1292 = vadd.xlane.f32.xlu0 %v1291
    %v1293 = vpop.xlane.xlu0 %1292
    %v1294 = vsel %vm50, %v1290, 0.0
    %1295 = vadd.xlane.f32.xlu0 %v1294
    %v1296 = vpop.xlane.xlu0 %1295
    %v1297 = vmul.f32 %v1293, %v1062
    %v1298 = vmul.f32 %v1296, %v1062
    %v1299 = vsub.f32 %v1289, %v1297
    %v1300 = vsub.f32 %v1290, %v1298
    %v1301 = vmul.f32 %v1299, %v1299
    %v1302 = vmul.f32 %v1300, %v1300
    %v1303 = vsel %vm50, %v1301, 0.0
    %1304 = vadd.xlane.f32.xlu0 %v1303
    %v1305 = vpop.xlane.xlu0 %1304
    %v1306 = vsel %vm50, %v1302, 0.0
    %1307 = vadd.xlane.f32.xlu0 %v1306
    %v1308 = vpop.xlane.xlu0 %1307
    %v1309 = vmul.f32 %v1305, %v1062
    %v1310 = vmul.f32 %v1308, %v1062
    %v1311 = vadd.f32 %v1309, 1e-12
    %v1312 = vadd.f32 %v1310, 1e-12
    %v1313 = vrsqrt.pop %v1311
    %v1314 = vrsqrt.pop %v1312
    %v1315 = vmul.f32 %v1299, %v1313
    %v1316 = vmul.f32 %v1300, %v1314
    %v1317 = vlaneseq
    %v1318 = vshrl.u32 %v1317, 7
    %v1319 = vsub.s32 6, %v1318
    %v1320 = vrot.slane %v41, %v1319
    %v1321 = vmul.f32 %v1315, %v1320
    %v1322 = vmul.f32 %v1316, %v1320
    %v1323 = vlaneseq
    %v1324 = vshrl.u32 %v1323, 7
    %v1325 = vsub.s32 7, %v1324
    %v1326 = vrot.slane %v41, %v1325
    %v1327 = vadd.f32 %v1321, %v1326
    %v1328 = vadd.f32 %v1322, %v1326
    %1329 = vst.msk [vmem:[#allocation5] sm:$0xff] %vm50, %v1327
    %1330 = vst.msk [vmem:[#allocation5 + $0x8] sm:$0xff] %vm50, %v1328
    // Predicated region
    $region34: #{bert_layer.1} parent=1 // pred_check
      _
    $region35: #{bert_layer.1} parent=1 // pred_check_branch
      %1332 = sbr.rel (0) target = $region37
    $region36: #{bert_layer.1} parent=1 // pred_region
      %s1334 = ssub.s32 256, 256
      %1335 = vsyncadd [#allocation4], %s1334
      %s1336 = sshll.u32 [#allocation5], 4
      %s1337 = int_to_ptr.vmem [resolvable:$true] %s1336
      %1342 = dma.vmem_to_hbm [thread:$0]  %s1337, 256, %s7, [#allocation4], 128, 128, 8
    $region37: #{bert_layer.1} parent=1 // pred_fallthru
      _
    // Predicated region
    $region38: #{bert_layer.1} parent=1 // pred_check
      _
    $region39: #{bert_layer.1} parent=1 // pred_check_branch
      %1344 = sbr.rel (0) target = $region41
    $region40: #{bert_layer.1} parent=1 // pred_region
      %1345 = dma.done [#allocation4], 256
    $region41: #{bert_layer.1} parent=1 // pred_fallthru
      _
    %1346 = vsyncpa [#allocation3], 1
    %1347 = vsyncpa [#allocation4], 1

</llo_original>
